<compile_context>
chip_gen: v7x
topology: tpu7x:2x2x1
jax: 0.10.0
libtpu: 0.0.40
codegen_flags: <defaults>
</compile_context>

<pallas_src>
import jax
import jax.numpy as jnp
from jax import lax
from jax.experimental import pallas as pl
from jax.experimental.pallas import tpu as pltpu


# --------------------------------------------------------------------------- #
# Kernel factory
# --------------------------------------------------------------------------- #
def _make_block_call(B, C_in, C_out, H, W, T, groups, *, kernel_size,
                     with_shortcut=False, C_skip=0, eps=1e-5):
    """pallas_call for one Block forward (CGN -> SiLU -> Conv2d, k in {1,3}).

    If with_shortcut (only for kernel_size=1), additionally adds a fused 1x1
    conv of a skip input (ResNetBlock residual): out += W_s @ x_skip + b_s.
    """
    assert kernel_size in (1, 3)
    assert not (with_shortcut and kernel_size == 3)
    HW = H * W
    inv_n = 1.0 / float(HW * (C_in // groups))

    def _norm_act(x, t, wct, bct, gmat, gmatt):
        # ---- GroupNorm statistics (affine=False), biased variance ----
        # single-pass E[x^2]-E[x]^2; fine for normalized-scale activations.
        s_c = jnp.sum(x, axis=1, keepdims=True)                 # (C_in, 1)
        q_c = jnp.sum(x * x, axis=1, keepdims=True)             # (C_in, 1)
        sq = jnp.concatenate([s_c, q_c], axis=1)                # (C_in, 2)
        sq_g = jnp.dot(gmatt, sq, preferred_element_type=jnp.float32)   # (G, 2)
        sq_c = jnp.dot(gmat, sq_g, preferred_element_type=jnp.float32)  # (C_in, 2)
        mean_c = sq_c[:, 0:1] * inv_n
        var_c = sq_c[:, 1:2] * inv_n - mean_c * mean_c
        inv_std = lax.rsqrt(var_c + eps)

        # ---- conditional scale / shift = Linear(SiLU(time_embed)) ----
        t = t * jax.nn.sigmoid(t)                                # SiLU
        ctx = jnp.dot(wct, t, preferred_element_type=jnp.float32) + bct  # (2*C_in, 1)
        scale = ctx[0:C_in, :]
        shift = ctx[C_in:2 * C_in, :]

        y = (x - mean_c) * (inv_std * (scale + 1.0)) + shift     # (C_in, HW)
        y = y * jax.nn.sigmoid(y)                                # SiLU
        return y.astype(jnp.bfloat16)                            # bf16 MXU operand

    def _conv3(y, wconv, k_ref):
        # Build (9*C_in, HW) im2col operand in VMEM scratch. Pre-masked sources
        # avoid row-wrap artifacts of flat lane shifts: dw=-1 taps never read
        # column W-1 legitimately; dw=+1 taps never read column 0.
        w_lane = lax.broadcasted_iota(jnp.int32, (1, HW), 1) % W
        zero = jnp.zeros_like(y)
        y_left = jnp.where(w_lane == (W - 1), zero, y)           # source for dw = -1
        y_right = jnp.where(w_lane == 0, zero, y)                # source for dw = +1

        def shift_lanes(src, o):
            # result[:, p] = src[:, p + o] if 0 <= p + o < HW else 0
            if o > 0:
                pad = jnp.zeros((C_in, o), src.dtype)
                return jnp.concatenate([src[:, o:], pad], axis=1)
            if o < 0:
                pad = jnp.zeros((C_in, -o), src.dtype)
                return jnp.concatenate([pad, src[:, :HW + o]], axis=1)
            return src

        tap = 0
        for dh in (-1, 0, 1):
            for dw in (-1, 0, 1):
                src = y_left if dw == -1 else (y_right if dw == 1 else y)
                k_ref[tap * C_in:(tap + 1) * C_in, :] = shift_lanes(src, dh * W + dw)
                tap += 1
        # One MXU matmul, K = 9*C_in, f32 accumulation.
        return jnp.dot(wconv, k_ref[...], preferred_element_type=jnp.float32)

    if kernel_size == 3:
        def kernel(x_ref, t_ref, wct_ref, bct_ref, gmat_ref, gmatt_ref,
                   wconv_ref, bconv_ref, out_ref, k_ref):
            y = _norm_act(x_ref[...], t_ref[...], wct_ref[...], bct_ref[...],
                          gmat_ref[...], gmatt_ref[...])
            acc = _conv3(y, wconv_ref[...], k_ref)
            out_ref[...] = acc + bconv_ref[...]

        scratch_shapes = [pltpu.VMEM((9 * C_in, HW), jnp.bfloat16)]
    elif not with_shortcut:
        def kernel(x_ref, t_ref, wct_ref, bct_ref, gmat_ref, gmatt_ref,
                   wconv_ref, bconv_ref, out_ref):
            y = _norm_act(x_ref[...], t_ref[...], wct_ref[...], bct_ref[...],
                          gmat_ref[...], gmatt_ref[...])
            acc = jnp.dot(wconv_ref[...], y, preferred_element_type=jnp.float32)
            out_ref[...] = acc + bconv_ref[...]

        scratch_shapes = []
    else:
        def kernel(x_ref, t_ref, wct_ref, bct_ref, gmat_ref, gmatt_ref,
                   wconv_ref, bconv_ref, xs_ref, ws_ref, bs_ref, out_ref):
            y = _norm_act(x_ref[...], t_ref[...], wct_ref[...], bct_ref[...],
                          gmat_ref[...], gmatt_ref[...])
            acc = jnp.dot(wconv_ref[...], y, preferred_element_type=jnp.float32)
            acc = acc + jnp.dot(ws_ref[...], xs_ref[...].astype(jnp.bfloat16),
                                preferred_element_type=jnp.float32)
            out_ref[...] = acc + bconv_ref[...] + bs_ref[...]

        scratch_shapes = []

    in_specs = [
        pl.BlockSpec((None, C_in, HW), lambda b: (b, 0, 0)),        # x  (B, C_in, HW)
        pl.BlockSpec((None, T, 1), lambda b: (b, 0, 0)),            # time_embed (B, T, 1)
        pl.BlockSpec((2 * C_in, T), lambda b: (0, 0)),              # ctx MLP weight^T
        pl.BlockSpec((2 * C_in, 1), lambda b: (0, 0)),              # ctx MLP bias
        pl.BlockSpec((C_in, groups), lambda b: (0, 0)),             # group membership
        pl.BlockSpec((groups, C_in), lambda b: (0, 0)),             # its transpose
        pl.BlockSpec((C_out, kernel_size * kernel_size * C_in),
                     lambda b: (0, 0)),                             # conv weight (bf16)
        pl.BlockSpec((C_out, 1), lambda b: (0, 0)),                 # conv bias
    ]
    if with_shortcut:
        in_specs += [
            pl.BlockSpec((None, C_skip, HW), lambda b: (b, 0, 0)),  # skip input
            pl.BlockSpec((C_out, C_skip), lambda b: (0, 0)),        # shortcut 1x1 weight
            pl.BlockSpec((C_out, 1), lambda b: (0, 0)),             # shortcut bias
        ]

    return pl.pallas_call(
        kernel,
        out_shape=jax.ShapeDtypeStruct((B, C_out, HW), jnp.float32),
        grid_spec=pltpu.PrefetchScalarGridSpec(
            num_scalar_prefetch=0,
            grid=(B,),
            in_specs=in_specs,
            out_specs=pl.BlockSpec((None, C_out, HW), lambda b: (b, 0, 0)),
            scratch_shapes=scratch_shapes,
        ),
        compiler_params=pltpu.CompilerParams(dimension_semantics=("parallel",)),
    )


# --------------------------------------------------------------------------- #
# Wrappers (NCHW in/out, reshapes only — no transposes of activations)
# --------------------------------------------------------------------------- #
def _group_matrices(C_in, groups):
    cpg = C_in // groups
    gmat = (jnp.arange(C_in)[:, None] // cpg
            == jnp.arange(groups)[None, :]).astype(jnp.float32)   # (C_in, groups)
    return gmat, jnp.transpose(gmat)


def _prep_block_params(p, C_in, C_out, kernel_size):
    wct = jnp.transpose(p["ctx_w"])                               # (2*C_in, T)
    bct = p["ctx_b"].reshape(2 * C_in, 1)
    # HWIO (k,k,C_in,C_out) -> (C_out, k*k*C_in); K index = (k*kh + kw)*C_in + ci.
    w_conv = jnp.transpose(p["conv_w"], (3, 0, 1, 2)).reshape(
        C_out, kernel_size * kernel_size * C_in).astype(jnp.bfloat16)
    b_conv = p["conv_b"].reshape(C_out, 1)
    return wct, bct, w_conv, b_conv


def block_forward(x_nchw, time_embed, params, groups):
    """Single Block: ConditionalGroupNorm -> SiLU -> Conv2d (up/down = Identity)."""
    B, C_in, H, W = x_nchw.shape
    T = time_embed.shape[1]
    ks = params["conv_w"].shape[0]
    C_out = params["conv_w"].shape[-1]
    HW = H * W

    fn = _make_block_call(B, C_in, C_out, H, W, T, groups, kernel_size=ks)
    gmat, gmatt = _group_matrices(C_in, groups)
    wct, bct, wconv, bconv = _prep_block_params(params, C_in, C_out, ks)

    out = fn(x_nchw.reshape(B, C_in, HW), time_embed.reshape(B, T, 1),
             wct, bct, gmat, gmatt, wconv, bconv)
    return out.reshape(B, C_out, H, W)


def resnet_block_forward(x_nchw, time_embed, params, groups):
    """ResNetBlock (up_resolutions = [None]*4): 4 Blocks + fused 1x1 shortcut add."""
    B, C_in, H, W = x_nchw.shape
    T = time_embed.shape[1]
    HW = H * W
    blocks = params["blocks"]

    x_flat = x_nchw.reshape(B, C_in, HW)
    temb = time_embed.reshape(B, T, 1)

    h = x_flat
    for bp in blocks[:-1]:
        ks = bp["conv_w"].shape[0]
        ci, co = bp["conv_w"].shape[2], bp["conv_w"].shape[3]
        fn = _make_block_call(B, ci, co, H, W, T, groups, kernel_size=ks)
        gmat, gmatt = _group_matrices(ci, groups)
        wct, bct, wconv, bconv = _prep_block_params(bp, ci, co, ks)
        h = fn(h, temb, wct, bct, gmat, gmatt, wconv, bconv)

    # Last Block (kernel_size=1) fused with the residual shortcut.
    bp = blocks[-1]
    ci, co = bp["conv_w"].shape[2], bp["conv_w"].shape[3]
    fn = _make_block_call(B, ci, co, H, W, T, groups, kernel_size=1,
                          with_shortcut=True, C_skip=C_in)
    gmat, gmatt = _group_matrices(ci, groups)
    wct, bct, wconv, bconv = _prep_block_params(bp, ci, co, 1)
    if "shortcut_w" in params:
        ws = jnp.transpose(params["shortcut_w"], (3, 0, 1, 2)).reshape(co, C_in)
        ws = ws.astype(jnp.bfloat16)
        bs = params["shortcut_b"].reshape(co, 1)
    else:  # in_channels == out_channels -> Identity shortcut
        ws = jnp.eye(co, C_in, dtype=jnp.bfloat16)
        bs = jnp.zeros((co, 1), jnp.float32)

    out = fn(h, temb, wct, bct, gmat, gmatt, wconv, bconv, x_flat, ws, bs)
    return out.reshape(B, co, H, W)


# --------------------------------------------------------------------------- #
# Pure-JAX references (mirror the PyTorch forward in f32)
# --------------------------------------------------------------------------- #
def ref_block(x_nchw, time_embed, params, groups, eps=1e-5):
    B, C, H, W = x_nchw.shape
    cpg = C // groups
    xg = x_nchw.reshape(B, groups, cpg * H * W)
    mean = jnp.mean(xg, axis=-1, keepdims=True)
    var = jnp.mean((xg - mean) ** 2, axis=-1, keepdims=True)
    x_norm = ((xg - mean) / jnp.sqrt(var + eps)).reshape(B, C, H, W)

    ctx = jax.nn.silu(time_embed) @ params["ctx_w"] + params["ctx_b"]   # (B, 2C)
    scale = ctx[:, :C][:, :, None, None]
    shift = ctx[:, C:][:, :, None, None]
    y = jax.nn.silu(x_norm * (scale + 1.0) + shift)

    out = lax.conv_general_dilated(
        y, params["conv_w"], window_strides=(1, 1), padding="SAME",
        dimension_numbers=("NCHW", "HWIO", "NCHW"))
    return out + params["conv_b"].reshape(1, -1, 1, 1)


def ref_resnet_block(x, time_embed, params, groups, eps=1e-5):
    out = x
    for bp in params["blocks"]:
        out = ref_block(out, time_embed, bp, groups, eps)
    if "shortcut_w" in params:
        sc = lax.conv_general_dilated(
            x, params["shortcut_w"], window_strides=(1, 1), padding="SAME",
            dimension_numbers=("NCHW", "HWIO", "NCHW"))
        sc = sc + params["shortcut_b"].reshape(1, -1, 1, 1)
    else:
        sc = x
    return sc + out


# --------------------------------------------------------------------------- #
# Demo / self-test
# --------------------------------------------------------------------------- #
if __name__ == "__main__":
    # Small shapes consistent with DownSampleBlock's first ResNetBlock
    # (norm groups must divide all channel counts).
    B = 2
    C_in, C_out = 32, 64
    H = W = 16
    T = 32              # time_embed_dim
    groups = 8          # norm_groups
    hidden = max(C_in, C_out) // 2   # compression_ratio = 2 -> 32

    key = jax.random.PRNGKey(0)
    keys = jax.random.split(key, 24)
    kit = iter(keys)

    x = jax.random.normal(next(kit), (B, C_in, H, W), jnp.float32)
    time_embed = jax.random.normal(next(kit), (B, T), jnp.float32)

    def make_block_params(ci, co, ks):
        # Real ConditionalGroupNorm zero-inits its context MLP; use small random
        # values so the conditioning path is actually exercised.
        return {
            "ctx_w": 0.02 * jax.random.normal(next(kit), (T, 2 * ci), jnp.float32),
            "ctx_b": 0.02 * jax.random.normal(next(kit), (1, 2 * ci), jnp.float32),
            "conv_w": 0.05 * jax.random.normal(next(kit), (ks, ks, ci, co), jnp.float32),
            "conv_b": 0.05 * jax.random.normal(next(kit), (1, co), jnp.float32),
        }

    # ResNetBlock layout: kernel sizes [1, 3, 3, 1], channels in->hid->hid->hid->out.
    channel_plan = [(C_in, hidden, 1), (hidden, hidden, 3),
                    (hidden, hidden, 3), (hidden, C_out, 1)]
    rn_params = {
        "blocks": [make_block_params(ci, co, ks) for ci, co, ks in channel_plan],
        "shortcut_w": 0.05 * jax.random.normal(next(kit), (1, 1, C_in, C_out), jnp.float32),
        "shortcut_b": 0.05 * jax.random.normal(next(kit), (1, C_out), jnp.float32),
    }

    # ---- Test 1: single Block (the 3x3 conv unit) ----
    x_blk = jax.random.normal(next(kit), (B, hidden, H, W), jnp.float32)
    out_blk = jax.block_until_ready(block_forward(x_blk, time_embed, rn_params["blocks"][1], groups))
    ref_blk = ref_block(x_blk, time_embed, rn_params["blocks"][1], groups)
    assert out_blk.shape == (B, hidden, H, W), out_blk.shape
    # bf16 conv operands with f32 accumulation -> slightly loose tolerance.
    assert jnp.allclose(out_blk, ref_blk, atol=2e-2, rtol=2e-2), \
        float(jnp.max(jnp.abs(out_blk - ref_blk)))

    # ---- Test 2: full ResNetBlock (4 Blocks + fused shortcut) ----
    out_rn = jax.block_until_ready(resnet_block_forward(x, time_embed, rn_params, groups))
    ref_rn = ref_resnet_block(x, time_embed, rn_params, groups)
    assert out_rn.shape == (B, C_out, H, W), out_rn.shape
    # bf16 rounding of activations/weights compounds over 4 conv layers vs the
    # pure-f32 reference -> looser tolerance for the composite.
    assert jnp.allclose(out_rn, ref_rn, atol=8e-2, rtol=8e-2), \
        float(jnp.max(jnp.abs(out_rn - ref_rn)))

    print("KERNEL_OK")
</pallas_src>

<mosaic_0001>
module attributes {stable_mosaic.version = 11 : i64} {
  func.func @kernel(%arg0: i32, %arg1: memref<1x32x256xf32, #tpu.memory_space<vmem>>, %arg2: memref<1x32x1xf32, #tpu.memory_space<vmem>>, %arg3: memref<64x32xf32, #tpu.memory_space<vmem>>, %arg4: memref<64x1xf32, #tpu.memory_space<vmem>>, %arg5: memref<32x8xf32, #tpu.memory_space<vmem>>, %arg6: memref<8x32xf32, #tpu.memory_space<vmem>>, %arg7: memref<32x288xbf16, #tpu.memory_space<vmem>>, %arg8: memref<32x1xf32, #tpu.memory_space<vmem>>, %arg9: memref<1x32x256xf32, #tpu.memory_space<vmem>>, %arg10: memref<288x256xbf16, #tpu.memory_space<vmem>>) attributes {dimension_semantics = [#tpu.dimension_semantics<parallel>], iteration_bounds = array<i64: 2>, scalar_prefetch = 0 : i64, scratch_operands = 1 : i64, tpu.core_type = #tpu.core_type<tc>, window_params = [{transform_indices = @transform_0, window_bounds = array<i64: 1, 32, 256>}, {transform_indices = @transform_1, window_bounds = array<i64: 1, 32, 1>}, {pipeline_mode = #tpu.pipeline_mode<synchronous>, transform_indices = @transform_2, window_bounds = array<i64: 64, 32>}, {pipeline_mode = #tpu.pipeline_mode<synchronous>, transform_indices = @transform_3, window_bounds = array<i64: 64, 1>}, {pipeline_mode = #tpu.pipeline_mode<synchronous>, transform_indices = @transform_4, window_bounds = array<i64: 32, 8>}, {pipeline_mode = #tpu.pipeline_mode<synchronous>, transform_indices = @transform_5, window_bounds = array<i64: 8, 32>}, {pipeline_mode = #tpu.pipeline_mode<synchronous>, transform_indices = @transform_6, window_bounds = array<i64: 32, 288>}, {pipeline_mode = #tpu.pipeline_mode<synchronous>, transform_indices = @transform_7, window_bounds = array<i64: 32, 1>}, {transform_indices = @transform_8, window_bounds = array<i64: 1, 32, 256>}]} {
    %c0 = arith.constant 0 : index
    %c0_0 = arith.constant 0 : index
    %c0_1 = arith.constant 0 : index
    %0 = vector.load %arg1[%c0, %c0_0, %c0_1] : memref<1x32x256xf32, #tpu.memory_space<vmem>>, vector<1x32x256xf32>
    %1 = vector.shape_cast %0 : vector<1x32x256xf32> to vector<32x256xf32>
    %c0_2 = arith.constant 0 : index
    %c0_3 = arith.constant 0 : index
    %c0_4 = arith.constant 0 : index
    %2 = vector.load %arg2[%c0_2, %c0_3, %c0_4] : memref<1x32x1xf32, #tpu.memory_space<vmem>>, vector<1x32x1xf32>
    %3 = vector.shape_cast %2 : vector<1x32x1xf32> to vector<32x1xf32>
    %c0_5 = arith.constant 0 : index
    %c0_6 = arith.constant 0 : index
    %4 = vector.load %arg3[%c0_5, %c0_6] : memref<64x32xf32, #tpu.memory_space<vmem>>, vector<64x32xf32>
    %c0_7 = arith.constant 0 : index
    %c0_8 = arith.constant 0 : index
    %5 = vector.load %arg4[%c0_7, %c0_8] : memref<64x1xf32, #tpu.memory_space<vmem>>, vector<64x1xf32>
    %c0_9 = arith.constant 0 : index
    %c0_10 = arith.constant 0 : index
    %6 = vector.load %arg5[%c0_9, %c0_10] : memref<32x8xf32, #tpu.memory_space<vmem>>, vector<32x8xf32>
    %c0_11 = arith.constant 0 : index
    %c0_12 = arith.constant 0 : index
    %7 = vector.load %arg6[%c0_11, %c0_12] : memref<8x32xf32, #tpu.memory_space<vmem>>, vector<8x32xf32>
    %cst = arith.constant dense<0.000000e+00> : vector<32xf32>
    %8 = vector.multi_reduction <add>, %1, %cst [1] : vector<32x256xf32> to vector<32xf32>
    %9 = vector.shape_cast %8 : vector<32xf32> to vector<32x1xf32>
    %10 = arith.mulf %1, %1 : vector<32x256xf32>
    %cst_13 = arith.constant dense<0.000000e+00> : vector<32xf32>
    %11 = vector.multi_reduction <add>, %10, %cst_13 [1] : vector<32x256xf32> to vector<32xf32>
    %12 = vector.shape_cast %11 : vector<32xf32> to vector<32x1xf32>
    %13 = tpu.concatenate %9, %12 in 1 : vector<32x1xf32>, vector<32x1xf32> -> vector<32x2xf32>
    %cst_14 = arith.constant dense<0.000000e+00> : vector<8x2xf32>
    %14 = tpu.matmul %7, %13, %cst_14 {dimension_numbers = #tpu.dot_dimension_numbers<[1], [0], [0], [1], [0, 0, 1, 1], [], []>} : vector<8x32xf32>, vector<32x2xf32>, vector<8x2xf32> -> vector<8x2xf32>
    %cst_15 = arith.constant dense<0.000000e+00> : vector<32x2xf32>
    %15 = tpu.matmul %6, %14, %cst_15 {dimension_numbers = #tpu.dot_dimension_numbers<[1], [0], [0], [1], [0, 0, 1, 1], [], []>} : vector<32x8xf32>, vector<8x2xf32>, vector<32x2xf32> -> vector<32x2xf32>
    %16 = vector.extract_strided_slice %15 {offsets = [0, 0], sizes = [32, 1], strides = [1, 1]} : vector<32x2xf32> to vector<32x1xf32>
    %cst_16 = arith.constant 9.765625E-4 : f32
    %17 = vector.broadcast %cst_16 : f32 to vector<32x1xf32>
    %18 = arith.mulf %16, %17 : vector<32x1xf32>
    %19 = vector.extract_strided_slice %15 {offsets = [0, 1], sizes = [32, 1], strides = [1, 1]} : vector<32x2xf32> to vector<32x1xf32>
    %cst_17 = arith.constant 9.765625E-4 : f32
    %20 = vector.broadcast %cst_17 : f32 to vector<32x1xf32>
    %21 = arith.mulf %19, %20 : vector<32x1xf32>
    %22 = arith.mulf %18, %18 : vector<32x1xf32>
    %23 = arith.subf %21, %22 : vector<32x1xf32>
    %cst_18 = arith.constant 9.99999974E-6 : f32
    %24 = vector.broadcast %cst_18 : f32 to vector<32x1xf32>
    %25 = arith.addf %23, %24 : vector<32x1xf32>
    %26 = math.rsqrt %25 : vector<32x1xf32>
    %27 = arith.negf %3 : vector<32x1xf32>
    %28 = math.exp %27 : vector<32x1xf32>
    %cst_19 = arith.constant 1.000000e+00 : f32
    %29 = vector.broadcast %cst_19 : f32 to vector<32x1xf32>
    %30 = arith.addf %29, %28 : vector<32x1xf32>
    %31 = arith.divf %29, %30 : vector<32x1xf32>
    %32 = arith.mulf %3, %31 : vector<32x1xf32>
    %cst_20 = arith.constant dense<0.000000e+00> : vector<64x1xf32>
    %33 = tpu.matmul %4, %32, %cst_20 {dimension_numbers = #tpu.dot_dimension_numbers<[1], [0], [0], [1], [0, 0, 1, 1], [], []>} : vector<64x32xf32>, vector<32x1xf32>, vector<64x1xf32> -> vector<64x1xf32>
    %34 = arith.addf %33, %5 : vector<64x1xf32>
    %35 = vector.extract_strided_slice %34 {offsets = [0, 0], sizes = [32, 1], strides = [1, 1]} : vector<64x1xf32> to vector<32x1xf32>
    %36 = vector.extract_strided_slice %34 {offsets = [32, 0], sizes = [32, 1], strides = [1, 1]} : vector<64x1xf32> to vector<32x1xf32>
    %37 = vector.broadcast %18 : vector<32x1xf32> to vector<32x256xf32>
    %38 = arith.subf %1, %37 : vector<32x256xf32>
    %cst_21 = arith.constant 1.000000e+00 : f32
    %39 = vector.broadcast %cst_21 : f32 to vector<32x1xf32>
    %40 = arith.addf %35, %39 : vector<32x1xf32>
    %41 = arith.mulf %26, %40 : vector<32x1xf32>
    %42 = vector.broadcast %41 : vector<32x1xf32> to vector<32x256xf32>
    %43 = arith.mulf %38, %42 : vector<32x256xf32>
    %44 = vector.broadcast %36 : vector<32x1xf32> to vector<32x256xf32>
    %45 = arith.addf %43, %44 : vector<32x256xf32>
    %46 = arith.negf %45 : vector<32x256xf32>
    %47 = math.exp %46 : vector<32x256xf32>
    %cst_22 = arith.constant 1.000000e+00 : f32
    %48 = vector.broadcast %cst_22 : f32 to vector<32x256xf32>
    %49 = arith.addf %48, %47 : vector<32x256xf32>
    %50 = arith.divf %48, %49 : vector<32x256xf32>
    %51 = arith.mulf %45, %50 : vector<32x256xf32>
    %52 = arith.truncf %51 : vector<32x256xf32> to vector<32x256xbf16>
    %c0_23 = arith.constant 0 : index
    %c0_24 = arith.constant 0 : index
    %53 = vector.load %arg7[%c0_23, %c0_24] : memref<32x288xbf16, #tpu.memory_space<vmem>>, vector<32x288xbf16>
    %54 = tpu.iota {dimensions = array<i32: 1>} : vector<1x256xi32>
    %c16_i32 = arith.constant 16 : i32
    %c0_i32 = arith.constant 0 : i32
    %55 = arith.cmpi eq, %c16_i32, %c0_i32 : i32
    %c1_i32 = arith.constant 1 : i32
    %56 = arith.select %55, %c1_i32, %c16_i32 : i32
    %57 = vector.broadcast %56 : i32 to vector<1x256xi32>
    %58 = arith.remsi %54, %57 : vector<1x256xi32>
    %c0_i32_25 = arith.constant 0 : i32
    %59 = vector.broadcast %c0_i32_25 : i32 to vector<1x256xi32>
    %60 = arith.cmpi ne, %58, %59 : vector<1x256xi32>
    %c0_i32_26 = arith.constant 0 : i32
    %61 = vector.broadcast %c0_i32_26 : i32 to vector<1x256xi32>
    %62 = arith.cmpi slt, %58, %61 : vector<1x256xi32>
    %c0_i32_27 = arith.constant 0 : i32
    %63 = arith.cmpi slt, %56, %c0_i32_27 : i32
    %64 = vector.broadcast %63 : i1 to vector<1x256xi1>
    %65 = vector.broadcast %64 : vector<1x256xi1> to vector<1x256xi1>
    %66 = arith.xori %62, %65 : vector<1x256xi1>
    %67 = arith.andi %66, %60 : vector<1x256xi1>
    %68 = vector.broadcast %56 : i32 to vector<1x256xi32>
    %69 = arith.addi %58, %68 : vector<1x256xi32>
    %70 = arith.select %67, %69, %58 : vector<1x256xi1>, vector<1x256xi32>
    %cst_28 = arith.constant 0.000000e+00 : bf16
    %71 = vector.broadcast %cst_28 : bf16 to vector<32x256xbf16>
    %c15_i32 = arith.constant 15 : i32
    %72 = vector.broadcast %c15_i32 : i32 to vector<1x256xi32>
    %73 = arith.cmpi eq, %70, %72 : vector<1x256xi32>
    %74 = vector.shape_cast %73 : vector<1x256xi1> to vector<1x256xi1>
    %75 = vector.broadcast %74 : vector<1x256xi1> to vector<32x256xi1>
    %76 = arith.select %75, %71, %52 : vector<32x256xi1>, vector<32x256xbf16>
    %c0_i32_29 = arith.constant 0 : i32
    %77 = vector.broadcast %c0_i32_29 : i32 to vector<1x256xi32>
    %78 = arith.cmpi eq, %70, %77 : vector<1x256xi32>
    %79 = vector.shape_cast %78 : vector<1x256xi1> to vector<1x256xi1>
    %80 = vector.broadcast %79 : vector<1x256xi1> to vector<32x256xi1>
    %81 = arith.select %80, %71, %52 : vector<32x256xi1>, vector<32x256xbf16>
    %cst_30 = arith.constant 0.000000e+00 : bf16
    %82 = vector.broadcast %cst_30 : bf16 to vector<32x17xbf16>
    %83 = vector.extract_strided_slice %76 {offsets = [0, 0], sizes = [32, 239], strides = [1, 1]} : vector<32x256xbf16> to vector<32x239xbf16>
    %84 = tpu.concatenate %82, %83 in 1 : vector<32x17xbf16>, vector<32x239xbf16> -> vector<32x256xbf16>
    %c0_31 = arith.constant 0 : index
    %c0_32 = arith.constant 0 : index
    %85 = vector.load %arg10[%c0_31, %c0_32] : memref<288x256xbf16, #tpu.memory_space<vmem>>, vector<32x256xbf16>
    tpu.vector_store %arg10[%c0_31, %c0_32], %84 {strides = array<i32>} : memref<288x256xbf16, #tpu.memory_space<vmem>>, vector<32x256xbf16>,
    %cst_33 = arith.constant 0.000000e+00 : bf16
    %86 = vector.broadcast %cst_33 : bf16 to vector<32x16xbf16>
    %87 = vector.extract_strided_slice %52 {offsets = [0, 0], sizes = [32, 240], strides = [1, 1]} : vector<32x256xbf16> to vector<32x240xbf16>
    %88 = tpu.concatenate %86, %87 in 1 : vector<32x16xbf16>, vector<32x240xbf16> -> vector<32x256xbf16>
    %c32 = arith.constant 32 : index
    %c0_34 = arith.constant 0 : index
    %89 = vector.load %arg10[%c32, %c0_34] : memref<288x256xbf16, #tpu.memory_space<vmem>>, vector<32x256xbf16>
    tpu.vector_store %arg10[%c32, %c0_34], %88 {strides = array<i32>} : memref<288x256xbf16, #tpu.memory_space<vmem>>, vector<32x256xbf16>,
    %cst_35 = arith.constant 0.000000e+00 : bf16
    %90 = vector.broadcast %cst_35 : bf16 to vector<32x15xbf16>
    %91 = vector.extract_strided_slice %81 {offsets = [0, 0], sizes = [32, 241], strides = [1, 1]} : vector<32x256xbf16> to vector<32x241xbf16>
    %92 = tpu.concatenate %90, %91 in 1 : vector<32x15xbf16>, vector<32x241xbf16> -> vector<32x256xbf16>
    %c64 = arith.constant 64 : index
    %c0_36 = arith.constant 0 : index
    %93 = vector.load %arg10[%c64, %c0_36] : memref<288x256xbf16, #tpu.memory_space<vmem>>, vector<32x256xbf16>
    tpu.vector_store %arg10[%c64, %c0_36], %92 {strides = array<i32>} : memref<288x256xbf16, #tpu.memory_space<vmem>>, vector<32x256xbf16>,
    %cst_37 = arith.constant 0.000000e+00 : bf16
    %94 = vector.broadcast %cst_37 : bf16 to vector<32x1xbf16>
    %95 = vector.extract_strided_slice %76 {offsets = [0, 0], sizes = [32, 255], strides = [1, 1]} : vector<32x256xbf16> to vector<32x255xbf16>
    %96 = tpu.concatenate %94, %95 in 1 : vector<32x1xbf16>, vector<32x255xbf16> -> vector<32x256xbf16>
    %c96 = arith.constant 96 : index
    %c0_38 = arith.constant 0 : index
    %97 = vector.load %arg10[%c96, %c0_38] : memref<288x256xbf16, #tpu.memory_space<vmem>>, vector<32x256xbf16>
    tpu.vector_store %arg10[%c96, %c0_38], %96 {strides = array<i32>} : memref<288x256xbf16, #tpu.memory_space<vmem>>, vector<32x256xbf16>,
    %c128 = arith.constant 128 : index
    %c0_39 = arith.constant 0 : index
    %98 = vector.load %arg10[%c128, %c0_39] : memref<288x256xbf16, #tpu.memory_space<vmem>>, vector<32x256xbf16>
    tpu.vector_store %arg10[%c128, %c0_39], %52 {strides = array<i32>} : memref<288x256xbf16, #tpu.memory_space<vmem>>, vector<32x256xbf16>,
    %cst_40 = arith.constant 0.000000e+00 : bf16
    %99 = vector.broadcast %cst_40 : bf16 to vector<32x1xbf16>
    %100 = vector.extract_strided_slice %81 {offsets = [0, 1], sizes = [32, 255], strides = [1, 1]} : vector<32x256xbf16> to vector<32x255xbf16>
    %101 = tpu.concatenate %100, %99 in 1 : vector<32x255xbf16>, vector<32x1xbf16> -> vector<32x256xbf16>
    %c160 = arith.constant 160 : index
    %c0_41 = arith.constant 0 : index
    %102 = vector.load %arg10[%c160, %c0_41] : memref<288x256xbf16, #tpu.memory_space<vmem>>, vector<32x256xbf16>
    tpu.vector_store %arg10[%c160, %c0_41], %101 {strides = array<i32>} : memref<288x256xbf16, #tpu.memory_space<vmem>>, vector<32x256xbf16>,
    %cst_42 = arith.constant 0.000000e+00 : bf16
    %103 = vector.broadcast %cst_42 : bf16 to vector<32x15xbf16>
    %104 = vector.extract_strided_slice %76 {offsets = [0, 15], sizes = [32, 241], strides = [1, 1]} : vector<32x256xbf16> to vector<32x241xbf16>
    %105 = tpu.concatenate %104, %103 in 1 : vector<32x241xbf16>, vector<32x15xbf16> -> vector<32x256xbf16>
    %c192 = arith.constant 192 : index
    %c0_43 = arith.constant 0 : index
    %106 = vector.load %arg10[%c192, %c0_43] : memref<288x256xbf16, #tpu.memory_space<vmem>>, vector<32x256xbf16>
    tpu.vector_store %arg10[%c192, %c0_43], %105 {strides = array<i32>} : memref<288x256xbf16, #tpu.memory_space<vmem>>, vector<32x256xbf16>,
    %cst_44 = arith.constant 0.000000e+00 : bf16
    %107 = vector.broadcast %cst_44 : bf16 to vector<32x16xbf16>
    %108 = vector.extract_strided_slice %52 {offsets = [0, 16], sizes = [32, 240], strides = [1, 1]} : vector<32x256xbf16> to vector<32x240xbf16>
    %109 = tpu.concatenate %108, %107 in 1 : vector<32x240xbf16>, vector<32x16xbf16> -> vector<32x256xbf16>
    %c224 = arith.constant 224 : index
    %c0_45 = arith.constant 0 : index
    %110 = vector.load %arg10[%c224, %c0_45] : memref<288x256xbf16, #tpu.memory_space<vmem>>, vector<32x256xbf16>
    tpu.vector_store %arg10[%c224, %c0_45], %109 {strides = array<i32>} : memref<288x256xbf16, #tpu.memory_space<vmem>>, vector<32x256xbf16>,
    %cst_46 = arith.constant 0.000000e+00 : bf16
    %111 = vector.broadcast %cst_46 : bf16 to vector<32x17xbf16>
    %112 = vector.extract_strided_slice %81 {offsets = [0, 17], sizes = [32, 239], strides = [1, 1]} : vector<32x256xbf16> to vector<32x239xbf16>
    %113 = tpu.concatenate %112, %111 in 1 : vector<32x239xbf16>, vector<32x17xbf16> -> vector<32x256xbf16>
    %c256 = arith.constant 256 : index
    %c0_47 = arith.constant 0 : index
    %114 = vector.load %arg10[%c256, %c0_47] : memref<288x256xbf16, #tpu.memory_space<vmem>>, vector<32x256xbf16>
    tpu.vector_store %arg10[%c256, %c0_47], %113 {strides = array<i32>} : memref<288x256xbf16, #tpu.memory_space<vmem>>, vector<32x256xbf16>,
    %c0_48 = arith.constant 0 : index
    %c0_49 = arith.constant 0 : index
    %115 = vector.load %arg10[%c0_48, %c0_49] : memref<288x256xbf16, #tpu.memory_space<vmem>>, vector<288x256xbf16>
    %cst_50 = arith.constant dense<0.000000e+00> : vector<32x256xf32>
    %116 = tpu.matmul %53, %115, %cst_50 {dimension_numbers = #tpu.dot_dimension_numbers<[1], [0], [0], [1], [0, 0, 1, 1], [], []>} : vector<32x288xbf16>, vector<288x256xbf16>, vector<32x256xf32> -> vector<32x256xf32>
    %c0_51 = arith.constant 0 : index
    %c0_52 = arith.constant 0 : index
    %117 = vector.load %arg8[%c0_51, %c0_52] : memref<32x1xf32, #tpu.memory_space<vmem>>, vector<32x1xf32>
    %118 = vector.broadcast %117 : vector<32x1xf32> to vector<32x256xf32>
    %119 = arith.addf %116, %118 : vector<32x256xf32>
    %c0_53 = arith.constant 0 : index
    %c0_54 = arith.constant 0 : index
    %c0_55 = arith.constant 0 : index
    %120 = vector.load %arg9[%c0_53, %c0_54, %c0_55] : memref<1x32x256xf32, #tpu.memory_space<vmem>>, vector<1x32x256xf32>
    %121 = vector.shape_cast %120 : vector<1x32x256xf32> to vector<32x256xf32>
    %122 = vector.shape_cast %119 : vector<32x256xf32> to vector<1x32x256xf32>
    tpu.vector_store %arg9[%c0_53, %c0_54, %c0_55], %122 {strides = array<i32>} : memref<1x32x256xf32, #tpu.memory_space<vmem>>, vector<1x32x256xf32>,
    return
  }
  func.func @transform_0(%arg0: i32) -> (i32, i32, i32) {
    %c0_i32 = arith.constant 0 : i32
    %c0_i32_0 = arith.constant 0 : i32
    %c0_i32_1 = arith.constant 0 : i32
    return %arg0, %c0_i32, %c0_i32_0 : i32, i32, i32
  }
  func.func @transform_1(%arg0: i32) -> (i32, i32, i32) {
    %c0_i32 = arith.constant 0 : i32
    %c0_i32_0 = arith.constant 0 : i32
    %c0_i32_1 = arith.constant 0 : i32
    return %arg0, %c0_i32, %c0_i32_0 : i32, i32, i32
  }
  func.func @transform_2(%arg0: i32) -> (i32, i32) {
    %c0_i32 = arith.constant 0 : i32
    %c0_i32_0 = arith.constant 0 : i32
    %c0_i32_1 = arith.constant 0 : i32
    return %c0_i32, %c0_i32_0 : i32, i32
  }
  func.func @transform_3(%arg0: i32) -> (i32, i32) {
    %c0_i32 = arith.constant 0 : i32
    %c0_i32_0 = arith.constant 0 : i32
    %c0_i32_1 = arith.constant 0 : i32
    return %c0_i32, %c0_i32_0 : i32, i32
  }
  func.func @transform_4(%arg0: i32) -> (i32, i32) {
    %c0_i32 = arith.constant 0 : i32
    %c0_i32_0 = arith.constant 0 : i32
    %c0_i32_1 = arith.constant 0 : i32
    return %c0_i32, %c0_i32_0 : i32, i32
  }
  func.func @transform_5(%arg0: i32) -> (i32, i32) {
    %c0_i32 = arith.constant 0 : i32
    %c0_i32_0 = arith.constant 0 : i32
    %c0_i32_1 = arith.constant 0 : i32
    return %c0_i32, %c0_i32_0 : i32, i32
  }
  func.func @transform_6(%arg0: i32) -> (i32, i32) {
    %c0_i32 = arith.constant 0 : i32
    %c0_i32_0 = arith.constant 0 : i32
    %c0_i32_1 = arith.constant 0 : i32
    return %c0_i32, %c0_i32_0 : i32, i32
  }
  func.func @transform_7(%arg0: i32) -> (i32, i32) {
    %c0_i32 = arith.constant 0 : i32
    %c0_i32_0 = arith.constant 0 : i32
    %c0_i32_1 = arith.constant 0 : i32
    return %c0_i32, %c0_i32_0 : i32, i32
  }
  func.func @transform_8(%arg0: i32) -> (i32, i32, i32) {
    %c0_i32 = arith.constant 0 : i32
    %c0_i32_0 = arith.constant 0 : i32
    %c0_i32_1 = arith.constant 0 : i32
    return %arg0, %c0_i32, %c0_i32_0 : i32, i32, i32
  }
}

</mosaic_0001>

<llo_original>
// kernel: tpu_custom_call.1
$region0: #{tpu_custom_call.1}
  #allocation0 [shape = 'u32[]', space=smem, size = 0x4, offset = 0x4, fixed_abs, tag = 'smem constant byte address 0x4 - core index']
  #allocation1 [shape = 'u32[144,128]{1,0:T(1,128)}', space=vmem, size = 0x12000, scoped, tag = 'internal scratch']
  #allocation2 [shape = 'bf16[288,256]{1,0:T(16,128)(2,1)}', space=vmem, size = 0x24000, scoped, tag = 'scratch operand']
  %s0 = inlined_call_operand.vmem [shape: f32[2,32,256], index: 0, kind: input, shape index: {}]
  %s1 = inlined_call_operand.vmem [shape: f32[2,32,1], index: 1, kind: input, shape index: {}]
  %s2 = inlined_call_operand.vmem [shape: f32[64,32], index: 2, kind: input, shape index: {}]
  %s3 = inlined_call_operand.vmem [shape: f32[64,1], index: 3, kind: input, shape index: {}]
  %s4 = inlined_call_operand.vmem [shape: f32[32,8], index: 4, kind: input, shape index: {}]
  %s5 = inlined_call_operand.vmem [shape: f32[8,32], index: 5, kind: input, shape index: {}]
  %s6 = inlined_call_operand.vmem [shape: bf16[32,288], index: 6, kind: input, shape index: {}]
  %s7 = inlined_call_operand.vmem [shape: f32[32,1], index: 7, kind: input, shape index: {}]
  %s8 = inlined_call_operand.hbm [shape: f32[2,32,256], index: 8, kind: output, shape index: {}]
  %s9 = sld [smem:[#allocation0]]
  $region65: #{tpu_custom_call.1} parent=0
    _
  %s11 = ssub.s32 1, %s9
  %s12 = scalar_select 0, %s11, %s9
  $region1: #{tpu_custom_call.1} parent=0
    #allocation3 [shape = 'u8[65536]{0}', space=vmem, size = 0x10000, scoped, tag = 'output window, operand 0']
    #allocation4 [shape = 's32[2]{0}', space=sflag, size = 0x8, scoped, tag = 'scoped memory for tpu_custom_call.1']
    %13 = vsyncpa [#allocation4], 0
    %s14 = scalar_lea.sflag [#allocation4], 1
    %15 = vsyncpa %s14, 0
    loop: start=0, step=1, limit=4
    $region2: #{tpu_custom_call.1} parent=1 // loop_pre_header
      _
    $region3: #{tpu_custom_call.1} parent=1 // loop_header
      %s17 = sphi 0, %s21
      %p18 = scmp.ge.s32.totalorder %s17, 4
      %s27 = sphi 0, %s29
      %s30 = sphi 0, %s27
      %s31 = sphi 0, %s30
      %s47 = sphi 0, %s31
      %s53 = sphi 0, %s55
      %s56 = sphi 0, %s53
      %s57 = sphi 0, %s56
      %s73 = sphi 0, %s57
      %s77 = sphi 0, %s77
      %s79 = sphi 0, %s77
      %s80 = sphi 0, %s79
      %s94 = sphi 0, %s80
      %s98 = sphi 0, %s98
      %s100 = sphi 0, %s98
      %s101 = sphi 0, %s100
      %s115 = sphi 0, %s101
      %s119 = sphi 0, %s119
      %s121 = sphi 0, %s119
      %s122 = sphi 0, %s121
      %s136 = sphi 0, %s122
      %s140 = sphi 0, %s140
      %s142 = sphi 0, %s140
      %s143 = sphi 0, %s142
      %s157 = sphi 0, %s143
      %s161 = sphi 0, %s161
      %s163 = sphi 0, %s161
      %s164 = sphi 0, %s163
      %s178 = sphi 0, %s164
      %s182 = sphi 0, %s182
      %s184 = sphi 0, %s182
      %s185 = sphi 0, %s184
      %s199 = sphi 0, %s185
      %s205 = sphi 0, %s207
      %s208 = sphi 0, %s205
      %s209 = sphi 0, %s208
      %s225 = sphi 0, %s209
    $region4: #{tpu_custom_call.1} parent=1 // loop_header_branch
      %20 = sbr.rel (%p18) target = $region8
    $region5: #{tpu_custom_call.1} parent=1 // loop_body
      %s22 = ssub.s32 %s17, 1
      %s23 = ssub.s32 %s17, 2
      %s24 = sadd.s32 %s17, 1
      %s25 = ssub.s32 %s17, %s24
      %p26 = scmp.eq.s32.totalorder %s25, 0
      %s28 = sadd.s32 %s27, 1
      %s29 = scalar_select %p26, %s27, %s28
      %p32 = pneg %p26
      %p33 = scmp.eq.s32.totalorder %s17, 1
      %p34 = por %p32, %p33
      %p35 = scmp.ne.s32.totalorder %s27, %s30
      %p36 = scmp.eq.s32.totalorder %s17, 0
      %p37 = por %p35, %p36
      %p38 = scmp.ne.s32.totalorder %s27, %s30
      %p39 = scmp.eq.s32.totalorder %s22, 1
      %p40 = por %p38, %p39
      %p41 = scmp.ne.s32.totalorder %s30, %s31
      %p42 = scmp.eq.s32.totalorder %s22, 0
      %p43 = por %p41, %p42
      %p44 = scmp.ne.s32.totalorder %s30, %s31
      %p45 = scmp.eq.s32.totalorder %s23, 1
      %p46 = por %p44, %p45
      %p48 = scmp.ne.s32.totalorder %s31, %s47
      %p49 = scmp.eq.s32.totalorder %s23, 0
      %p50 = por %p48, %p49
      %s51 = ssub.s32 %s17, %s24
      %p52 = scmp.eq.s32.totalorder %s51, 0
      %s54 = sadd.s32 %s53, 1
      %s55 = scalar_select %p52, %s53, %s54
      %p58 = pneg %p52
      %p59 = scmp.eq.s32.totalorder %s17, 1
      %p60 = por %p58, %p59
      %p61 = scmp.ne.s32.totalorder %s53, %s56
      %p62 = scmp.eq.s32.totalorder %s17, 0
      %p63 = por %p61, %p62
      %p64 = scmp.ne.s32.totalorder %s53, %s56
      %p65 = scmp.eq.s32.totalorder %s22, 1
      %p66 = por %p64, %p65
      %p67 = scmp.ne.s32.totalorder %s56, %s57
      %p68 = scmp.eq.s32.totalorder %s22, 0
      %p69 = por %p67, %p68
      %p70 = scmp.ne.s32.totalorder %s56, %s57
      %p71 = scmp.eq.s32.totalorder %s23, 1
      %p72 = por %p70, %p71
      %p74 = scmp.ne.s32.totalorder %s57, %s73
      %p75 = scmp.eq.s32.totalorder %s23, 0
      %p76 = por %p74, %p75
      %s78 = sadd.s32 %s77, 1
      %p81 = scmp.eq.s32.totalorder %s17, 1
      %p82 = scmp.ne.s32.totalorder %s77, %s79
      %p83 = scmp.eq.s32.totalorder %s17, 0
      %p84 = por %p82, %p83
      %p85 = scmp.ne.s32.totalorder %s77, %s79
      %p86 = scmp.eq.s32.totalorder %s22, 1
      %p87 = por %p85, %p86
      %p88 = scmp.ne.s32.totalorder %s79, %s80
      %p89 = scmp.eq.s32.totalorder %s22, 0
      %p90 = por %p88, %p89
      %p91 = scmp.ne.s32.totalorder %s79, %s80
      %p92 = scmp.eq.s32.totalorder %s23, 1
      %p93 = por %p91, %p92
      %p95 = scmp.ne.s32.totalorder %s80, %s94
      %p96 = scmp.eq.s32.totalorder %s23, 0
      %p97 = por %p95, %p96
      %s99 = sadd.s32 %s98, 1
      %p102 = scmp.eq.s32.totalorder %s17, 1
      %p103 = scmp.ne.s32.totalorder %s98, %s100
      %p104 = scmp.eq.s32.totalorder %s17, 0
      %p105 = por %p103, %p104
      %p106 = scmp.ne.s32.totalorder %s98, %s100
      %p107 = scmp.eq.s32.totalorder %s22, 1
      %p108 = por %p106, %p107
      %p109 = scmp.ne.s32.totalorder %s100, %s101
      %p110 = scmp.eq.s32.totalorder %s22, 0
      %p111 = por %p109, %p110
      %p112 = scmp.ne.s32.totalorder %s100, %s101
      %p113 = scmp.eq.s32.totalorder %s23, 1
      %p114 = por %p112, %p113
      %p116 = scmp.ne.s32.totalorder %s101, %s115
      %p117 = scmp.eq.s32.totalorder %s23, 0
      %p118 = por %p116, %p117
      %s120 = sadd.s32 %s119, 1
      %p123 = scmp.eq.s32.totalorder %s17, 1
      %p124 = scmp.ne.s32.totalorder %s119, %s121
      %p125 = scmp.eq.s32.totalorder %s17, 0
      %p126 = por %p124, %p125
      %p127 = scmp.ne.s32.totalorder %s119, %s121
      %p128 = scmp.eq.s32.totalorder %s22, 1
      %p129 = por %p127, %p128
      %p130 = scmp.ne.s32.totalorder %s121, %s122
      %p131 = scmp.eq.s32.totalorder %s22, 0
      %p132 = por %p130, %p131
      %p133 = scmp.ne.s32.totalorder %s121, %s122
      %p134 = scmp.eq.s32.totalorder %s23, 1
      %p135 = por %p133, %p134
      %p137 = scmp.ne.s32.totalorder %s122, %s136
      %p138 = scmp.eq.s32.totalorder %s23, 0
      %p139 = por %p137, %p138
      %s141 = sadd.s32 %s140, 1
      %p144 = scmp.eq.s32.totalorder %s17, 1
      %p145 = scmp.ne.s32.totalorder %s140, %s142
      %p146 = scmp.eq.s32.totalorder %s17, 0
      %p147 = por %p145, %p146
      %p148 = scmp.ne.s32.totalorder %s140, %s142
      %p149 = scmp.eq.s32.totalorder %s22, 1
      %p150 = por %p148, %p149
      %p151 = scmp.ne.s32.totalorder %s142, %s143
      %p152 = scmp.eq.s32.totalorder %s22, 0
      %p153 = por %p151, %p152
      %p154 = scmp.ne.s32.totalorder %s142, %s143
      %p155 = scmp.eq.s32.totalorder %s23, 1
      %p156 = por %p154, %p155
      %p158 = scmp.ne.s32.totalorder %s143, %s157
      %p159 = scmp.eq.s32.totalorder %s23, 0
      %p160 = por %p158, %p159
      %s162 = sadd.s32 %s161, 1
      %p165 = scmp.eq.s32.totalorder %s17, 1
      %p166 = scmp.ne.s32.totalorder %s161, %s163
      %p167 = scmp.eq.s32.totalorder %s17, 0
      %p168 = por %p166, %p167
      %p169 = scmp.ne.s32.totalorder %s161, %s163
      %p170 = scmp.eq.s32.totalorder %s22, 1
      %p171 = por %p169, %p170
      %p172 = scmp.ne.s32.totalorder %s163, %s164
      %p173 = scmp.eq.s32.totalorder %s22, 0
      %p174 = por %p172, %p173
      %p175 = scmp.ne.s32.totalorder %s163, %s164
      %p176 = scmp.eq.s32.totalorder %s23, 1
      %p177 = por %p175, %p176
      %p179 = scmp.ne.s32.totalorder %s164, %s178
      %p180 = scmp.eq.s32.totalorder %s23, 0
      %p181 = por %p179, %p180
      %s183 = sadd.s32 %s182, 1
      %p186 = scmp.eq.s32.totalorder %s17, 1
      %p187 = scmp.ne.s32.totalorder %s182, %s184
      %p188 = scmp.eq.s32.totalorder %s17, 0
      %p189 = por %p187, %p188
      %p190 = scmp.ne.s32.totalorder %s182, %s184
      %p191 = scmp.eq.s32.totalorder %s22, 1
      %p192 = por %p190, %p191
      %p193 = scmp.ne.s32.totalorder %s184, %s185
      %p194 = scmp.eq.s32.totalorder %s22, 0
      %p195 = por %p193, %p194
      %p196 = scmp.ne.s32.totalorder %s184, %s185
      %p197 = scmp.eq.s32.totalorder %s23, 1
      %p198 = por %p196, %p197
      %p200 = scmp.ne.s32.totalorder %s185, %s199
      %p201 = scmp.eq.s32.totalorder %s23, 0
      %p202 = por %p200, %p201
      %s203 = ssub.s32 %s17, %s24
      %p204 = scmp.eq.s32.totalorder %s203, 0
      %s206 = sadd.s32 %s205, 1
      %s207 = scalar_select %p204, %s205, %s206
      %p210 = pneg %p204
      %p211 = scmp.eq.s32.totalorder %s17, 1
      %p212 = por %p210, %p211
      %p213 = scmp.ne.s32.totalorder %s205, %s208
      %p214 = scmp.eq.s32.totalorder %s17, 0
      %p215 = por %p213, %p214
      %p216 = scmp.ne.s32.totalorder %s205, %s208
      %p217 = scmp.eq.s32.totalorder %s22, 1
      %p218 = por %p216, %p217
      %p219 = scmp.ne.s32.totalorder %s208, %s209
      %p220 = scmp.eq.s32.totalorder %s22, 0
      %p221 = por %p219, %p220
      %p222 = scmp.ne.s32.totalorder %s208, %s209
      %p223 = scmp.eq.s32.totalorder %s23, 1
      %p224 = por %p222, %p223
      %p226 = scmp.ne.s32.totalorder %s209, %s225
      %p227 = scmp.eq.s32.totalorder %s23, 0
      %p228 = por %p226, %p227
      %p229 = scmp.le.s32.totalorder 1, %s17
      %p230 = scmp.lt.s32.totalorder %s17, 3
      %p231 = pnand %p229, %p230
      %p232 = pneg %p231
      // Predicated region
      $region9: #{tpu_custom_call.1} parent=5 // pred_check
        _
      $region10: #{tpu_custom_call.1} parent=5 // pred_check_branch
        %234 = sbr.rel (%p231) target = $region12
      $region11: #{tpu_custom_call.1} parent=5 // pred_region
        %s235 = ssub.s32 %s17, 1
        // Predicated region
        $region13: #{tpu_custom_call.1} parent=11 // pred_check
          %p236 = pneg %p90
        $region14: #{tpu_custom_call.1} parent=11 // pred_check_branch
          %238 = sbr.rel (%p236) target = $region16
        $region15: #{tpu_custom_call.1} parent=11 // pred_region
          _
        $region16: #{tpu_custom_call.1} parent=11 // pred_fallthru
          _
        // Predicated region
        $region17: #{tpu_custom_call.1} parent=11 // pred_check
          %p239 = pneg %p111
        $region18: #{tpu_custom_call.1} parent=11 // pred_check_branch
          %241 = sbr.rel (%p239) target = $region20
        $region19: #{tpu_custom_call.1} parent=11 // pred_region
          _
        $region20: #{tpu_custom_call.1} parent=11 // pred_fallthru
          _
        // Predicated region
        $region21: #{tpu_custom_call.1} parent=11 // pred_check
          %p242 = pneg %p132
        $region22: #{tpu_custom_call.1} parent=11 // pred_check_branch
          %244 = sbr.rel (%p242) target = $region24
        $region23: #{tpu_custom_call.1} parent=11 // pred_region
          _
        $region24: #{tpu_custom_call.1} parent=11 // pred_fallthru
          _
        // Predicated region
        $region25: #{tpu_custom_call.1} parent=11 // pred_check
          %p245 = pneg %p153
        $region26: #{tpu_custom_call.1} parent=11 // pred_check_branch
          %247 = sbr.rel (%p245) target = $region28
        $region27: #{tpu_custom_call.1} parent=11 // pred_region
          _
        $region28: #{tpu_custom_call.1} parent=11 // pred_fallthru
          _
        // Predicated region
        $region29: #{tpu_custom_call.1} parent=11 // pred_check
          %p248 = pneg %p174
        $region30: #{tpu_custom_call.1} parent=11 // pred_check_branch
          %250 = sbr.rel (%p248) target = $region32
        $region31: #{tpu_custom_call.1} parent=11 // pred_region
          _
        $region32: #{tpu_custom_call.1} parent=11 // pred_fallthru
          _
        // Predicated region
        $region33: #{tpu_custom_call.1} parent=11 // pred_check
          %p251 = pneg %p195
        $region34: #{tpu_custom_call.1} parent=11 // pred_check_branch
          %253 = sbr.rel (%p251) target = $region36
        $region35: #{tpu_custom_call.1} parent=11 // pred_region
          _
        $region36: #{tpu_custom_call.1} parent=11 // pred_fallthru
          _
      $region12: #{tpu_custom_call.1} parent=5 // pred_fallthru
        _
      %p254 = scmp.lt.s32.totalorder %s17, 2
      // Predicated region
      $region37: #{tpu_custom_call.1} parent=5 // pred_check
        %p255 = pneg %p254
      $region38: #{tpu_custom_call.1} parent=5 // pred_check_branch
        %257 = sbr.rel (%p255) target = $region40
      $region39: #{tpu_custom_call.1} parent=5 // pred_region
        // Predicated region
        $region41: #{tpu_custom_call.1} parent=39 // pred_check
          %p258 = pneg %p37
        $region42: #{tpu_custom_call.1} parent=39 // pred_check_branch
          %260 = sbr.rel (%p258) target = $region44
        $region43: #{tpu_custom_call.1} parent=39 // pred_region
          %p261 = scmp.lt.s32.totalorder %s17, 1
          %s262 = scalar_select %p261, %s17, 1
          %s263 = smul.addr %s262, 8
          %s264 = smul.addr %s263, 8
          %s265 = scalar_lea.vmem %s0, %s264
        $region44: #{tpu_custom_call.1} parent=39 // pred_fallthru
          _
        // Predicated region
        $region45: #{tpu_custom_call.1} parent=39 // pred_check
          %p266 = pneg %p63
        $region46: #{tpu_custom_call.1} parent=39 // pred_check_branch
          %268 = sbr.rel (%p266) target = $region48
        $region47: #{tpu_custom_call.1} parent=39 // pred_region
          %p269 = scmp.lt.s32.totalorder %s17, 1
          %s270 = scalar_select %p269, %s17, 1
          %s271 = smul.addr %s270, 4
          %s272 = smul.addr %s271, 8
          %s273 = scalar_lea.vmem %s1, %s272
        $region48: #{tpu_custom_call.1} parent=39 // pred_fallthru
          _
      $region40: #{tpu_custom_call.1} parent=5 // pred_fallthru
        _
      %p274 = scmp.le.s32.totalorder 1, %s17
      %p275 = scmp.lt.s32.totalorder %s17, 3
      %p276 = pnand %p274, %p275
      %p277 = pneg %p276
      // Predicated region
      $region49: #{tpu_custom_call.1} parent=5 // pred_check
        _
      $region50: #{tpu_custom_call.1} parent=5 // pred_check_branch
        %279 = sbr.rel (%p276) target = $region52
      $region51: #{tpu_custom_call.1} parent=5 // pred_region
        %s280 = ssub.s32 %s17, 1
        %p281 = scmp.lt.s32.totalorder %s22, 1
        %s282 = scalar_select %p281, %s22, 1
        %s283 = smul.addr %s282, 8
        %s284 = smul.addr %s283, 8
        %s285 = scalar_lea.vmem %s0, %s284
        %p286 = pneg %p43
        %p287 = pneg %p40
        %p288 = scmp.lt.s32.totalorder %s22, 1
        %s289 = scalar_select %p288, %s22, 1
        %s290 = smul.addr %s289, 4
        %s291 = smul.addr %s290, 8
        %s292 = scalar_lea.vmem %s1, %s291
        %p293 = pneg %p69
        %p294 = pneg %p66
        %p295 = pneg %p90
        %p296 = pneg %p87
        %p297 = pneg %p111
        %p298 = pneg %p108
        %p299 = pneg %p132
        %p300 = pneg %p129
        %p301 = pneg %p153
        %p302 = pneg %p150
        %p303 = pneg %p174
        %p304 = pneg %p171
        %p305 = pneg %p195
        %p306 = pneg %p192
        %p307 = pneg %p221
        %p308 = pneg %p218
        %s309 = sand.u32 %s208, 1
        %s310 = scalar_lea.sflag [#allocation4], %s309
        %s311 = sand.u32 %s208, 1
        %s312 = smul.addr %s311, 64
        %s313 = scalar_lea.vmem [#allocation3], %s312
        %p314 = scmp.lt.s32.totalorder %s22, 1
        %s315 = scalar_select %p314, %s22, 1
        %s316 = smul.addr %s315, 8
        %s317 = smul.addr %s316, 8
        %s318 = scalar_lea.vmem %s0, %s317
        %p319 = scmp.lt.s32.totalorder %s22, 1
        %s320 = scalar_select %p319, %s22, 1
        %s321 = smul.addr %s320, 4
        %s322 = smul.addr %s321, 8
        %s323 = scalar_lea.vmem %s1, %s322
        %v327 = vld [vmem:[%s318] sm:$0xff]
        %v328 = vld [vmem:[%s318 + $0x8] sm:$0xff]
        %v329 = vld [vmem:[%s318 + $0x10] sm:$0xff]
        %v330 = vld [vmem:[%s318 + $0x18] sm:$0xff]
        %v331 = vld [vmem:[%s318 + $0x20] sm:$0xff]
        %v332 = vld [vmem:[%s318 + $0x28] sm:$0xff]
        %v333 = vld [vmem:[%s318 + $0x30] sm:$0xff]
        %v334 = vld [vmem:[%s318 + $0x38] sm:$0xff]
        %v335 = vld [vmem:[%s323] sm:$0xff]
        %v336 = vld [vmem:[%s323 + $0x8] sm:$0xff]
        %v337 = vld [vmem:[%s323 + $0x10] sm:$0xff]
        %v338 = vld [vmem:[%s323 + $0x18] sm:$0xff]
        %v339 = vld [vmem:[%s2] sm:$0xff]
        %v340 = vld [vmem:[%s2 + $0x8] sm:$0xff]
        %v341 = vld [vmem:[%s2 + $0x10] sm:$0xff]
        %v342 = vld [vmem:[%s2 + $0x18] sm:$0xff]
        %v343 = vld [vmem:[%s2 + $0x20] sm:$0xff]
        %v344 = vld [vmem:[%s2 + $0x28] sm:$0xff]
        %v345 = vld [vmem:[%s2 + $0x30] sm:$0xff]
        %v346 = vld [vmem:[%s2 + $0x38] sm:$0xff]
        %v347 = vld [vmem:[%s3] sm:$0xff]
        %v348 = vld [vmem:[%s3 + $0x8] sm:$0xff]
        %v349 = vld [vmem:[%s3 + $0x10] sm:$0xff]
        %v350 = vld [vmem:[%s3 + $0x18] sm:$0xff]
        %v351 = vld [vmem:[%s3 + $0x20] sm:$0xff]
        %v352 = vld [vmem:[%s3 + $0x28] sm:$0xff]
        %v353 = vld [vmem:[%s3 + $0x30] sm:$0xff]
        %v354 = vld [vmem:[%s3 + $0x38] sm:$0xff]
        %v355 = vld [vmem:[%s4] sm:$0xff]
        %v356 = vld [vmem:[%s4 + $0x8] sm:$0xff]
        %v357 = vld [vmem:[%s4 + $0x10] sm:$0xff]
        %v358 = vld [vmem:[%s4 + $0x18] sm:$0xff]
        %v359 = vld [vmem:[%s5] sm:$0xff]
        %v360 = vadd.f32 %v327, %v328
        %361 = vadd.xlane.f32.xlu0 %v360
        %v362 = vpop.xlane.xlu0 %361
        %v363 = vadd.f32 %v329, %v330
        %364 = vadd.xlane.f32.xlu0 %v363
        %v365 = vpop.xlane.xlu0 %364
        %v366 = vadd.f32 %v331, %v332
        %367 = vadd.xlane.f32.xlu0 %v366
        %v368 = vpop.xlane.xlu0 %367
        %v369 = vadd.f32 %v333, %v334
        %370 = vadd.xlane.f32.xlu0 %v369
        %v371 = vpop.xlane.xlu0 %370
        %v372 = vmul.f32 %v327, %v327
        %v373 = vmul.f32 %v328, %v328
        %v374 = vmul.f32 %v329, %v329
        %v375 = vmul.f32 %v330, %v330
        %v376 = vmul.f32 %v331, %v331
        %v377 = vmul.f32 %v332, %v332
        %v378 = vmul.f32 %v333, %v333
        %v379 = vmul.f32 %v334, %v334
        %v380 = vadd.f32 %v372, %v373
        %381 = vadd.xlane.f32.xlu0 %v380
        %v382 = vpop.xlane.xlu0 %381
        %v383 = vadd.f32 %v374, %v375
        %384 = vadd.xlane.f32.xlu0 %v383
        %v385 = vpop.xlane.xlu0 %384
        %v386 = vadd.f32 %v376, %v377
        %387 = vadd.xlane.f32.xlu0 %v386
        %v388 = vpop.xlane.xlu0 %387
        %v389 = vadd.f32 %v378, %v379
        %390 = vadd.xlane.f32.xlu0 %v389
        %v391 = vpop.xlane.xlu0 %390
        %vm392 = vcmask 7168
        %v393 = vsel %vm392, %v362, %v382
        %v394 = vsel %vm392, %v365, %v385
        %v395 = vsel %vm392, %v368, %v388
        %v396 = vsel %vm392, %v371, %v391
        %vm397 = vcmask 261120
        %v399 = vsel %vm397, %v359, 0
        %401 = vmatprep.subr.mxu0 0.0
        %402 = vmatpush1.msra.mxu0 %v393
        %403 = vmatprep.subr.mxu0 0.0
        %404 = vmatpush1.msra.mxu0 %v394
        %405 = vmatprep.subr.mxu0 0.0
        %406 = vmatpush1.msra.mxu0 %v395
        %407 = vmatprep.subr.mxu0 0.0
        %408 = vmatpush1.msra.mxu0 %v396
        %409 = vmatprep.subr.mxu0 0.0
        %410 = vmatpush1.msra.mxu0 0.0
        %411 = vmatprep.subr.mxu0 0.0
        %412 = vmatpush1.msra.mxu0 0.0
        %413 = vmatprep.subr.mxu0 0.0
        %414 = vmatpush1.msra.mxu0 0.0
        %415 = vmatprep.subr.mxu0 0.0
        %416 = vmatpush1.msra.mxu0 0.0
        %417 = vmatprep.subr.mxu0 0.0
        %418 = vmatpush1.msra.mxu0 0.0
        %419 = vmatprep.subr.mxu0 0.0
        %420 = vmatpush1.msra.mxu0 0.0
        %421 = vmatprep.subr.mxu0 0.0
        %422 = vmatpush1.msra.mxu0 0.0
        %423 = vmatprep.subr.mxu0 0.0
        %424 = vmatpush1.msra.mxu0 0.0
        %425 = vmatprep.subr.mxu0 0.0
        %426 = vmatpush1.msra.mxu0 0.0
        %427 = vmatprep.subr.mxu0 0.0
        %428 = vmatpush1.msra.mxu0 0.0
        %429 = vmatprep.subr.mxu0 0.0
        %430 = vmatpush1.msra.mxu0 0.0
        %431 = vmatprep.subr.mxu0 0.0
        %432 = vmatpush1.msra.mxu0 0.0
        %433 = vmatprep.subr.mxu0 0.0
        %434 = vmatpush1.msra.mxu0 0.0
        %435 = vmatprep.subr.mxu0 0.0
        %436 = vmatpush1.msra.mxu0 0.0
        %437 = vmatprep.subr.mxu0 0.0
        %438 = vmatpush1.msra.mxu0 0.0
        %439 = vmatprep.subr.mxu0 0.0
        %440 = vmatpush1.msra.mxu0 0.0
        %441 = vmatprep.subr.mxu0 0.0
        %442 = vmatpush1.msra.mxu0 0.0
        %443 = vmatprep.subr.mxu0 0.0
        %444 = vmatpush1.msra.mxu0 0.0
        %445 = vmatprep.subr.mxu0 0.0
        %446 = vmatpush1.msra.mxu0 0.0
        %447 = vmatprep.subr.mxu0 0.0
        %448 = vmatpush1.msra.mxu0 0.0
        %449 = vmatprep.subr.mxu0 0.0
        %450 = vmatpush1.msra.mxu0 0.0
        %451 = vmatprep.subr.mxu0 0.0
        %452 = vmatpush1.msra.mxu0 0.0
        %453 = vmatprep.subr.mxu0 0.0
        %454 = vmatpush1.msra.mxu0 0.0
        %455 = vmatprep.subr.mxu0 0.0
        %456 = vmatpush1.msra.mxu0 0.0
        %457 = vmatprep.subr.mxu0 0.0
        %458 = vmatpush1.msra.mxu0 0.0
        %459 = vmatprep.subr.mxu0 0.0
        %460 = vmatpush1.msra.mxu0 0.0
        %461 = vmatprep.subr.mxu0 0.0
        %462 = vmatpush1.msra.mxu0 0.0
        %463 = vmatprep.subr.mxu0 0.0
        %464 = vmatpush1.msra.mxu0 0.0
        %465 = vmatprep.mubr.f32.mxu0 0.0
        %466 = vmatmul.mubr.f32.gmra.mrb[0].mxu0 %v399
        %v467 = vpop.f32.mrb[0].mxu0
        %v468 = vadd.f32 0.0, %v467
        %v469 = vpop.f32.mrb[0].mxu0
        %470 = vdwg.mxu0
        %vm471 = vcmask 64512
        %v473 = vsel %vm471, %v355, 0
        %v476 = vsel %vm471, %v356, 0
        %v479 = vsel %vm471, %v357, 0
        %v482 = vsel %vm471, %v358, 0
        %484 = vmatprep.subr.mxu0 0.0
        %485 = vmatpush1.msra.mxu0 %v468
        %486 = vmatprep.subr.mxu0 0.0
        %487 = vmatpush1.msra.mxu0 0.0
        %488 = vmatprep.subr.mxu0 0.0
        %489 = vmatpush1.msra.mxu0 0.0
        %490 = vmatprep.subr.mxu0 0.0
        %491 = vmatpush1.msra.mxu0 0.0
        %492 = vmatprep.subr.mxu0 0.0
        %493 = vmatpush1.msra.mxu0 0.0
        %494 = vmatprep.subr.mxu0 0.0
        %495 = vmatpush1.msra.mxu0 0.0
        %496 = vmatprep.subr.mxu0 0.0
        %497 = vmatpush1.msra.mxu0 0.0
        %498 = vmatprep.subr.mxu0 0.0
        %499 = vmatpush1.msra.mxu0 0.0
        %500 = vmatprep.subr.mxu0 0.0
        %501 = vmatpush1.msra.mxu0 0.0
        %502 = vmatprep.subr.mxu0 0.0
        %503 = vmatpush1.msra.mxu0 0.0
        %504 = vmatprep.subr.mxu0 0.0
        %505 = vmatpush1.msra.mxu0 0.0
        %506 = vmatprep.subr.mxu0 0.0
        %507 = vmatpush1.msra.mxu0 0.0
        %508 = vmatprep.subr.mxu0 0.0
        %509 = vmatpush1.msra.mxu0 0.0
        %510 = vmatprep.subr.mxu0 0.0
        %511 = vmatpush1.msra.mxu0 0.0
        %512 = vmatprep.subr.mxu0 0.0
        %513 = vmatpush1.msra.mxu0 0.0
        %514 = vmatprep.subr.mxu0 0.0
        %515 = vmatpush1.msra.mxu0 0.0
        %516 = vmatprep.subr.mxu0 0.0
        %517 = vmatpush1.msra.mxu0 0.0
        %518 = vmatprep.subr.mxu0 0.0
        %519 = vmatpush1.msra.mxu0 0.0
        %520 = vmatprep.subr.mxu0 0.0
        %521 = vmatpush1.msra.mxu0 0.0
        %522 = vmatprep.subr.mxu0 0.0
        %523 = vmatpush1.msra.mxu0 0.0
        %524 = vmatprep.subr.mxu0 0.0
        %525 = vmatpush1.msra.mxu0 0.0
        %526 = vmatprep.subr.mxu0 0.0
        %527 = vmatpush1.msra.mxu0 0.0
        %528 = vmatprep.subr.mxu0 0.0
        %529 = vmatpush1.msra.mxu0 0.0
        %530 = vmatprep.subr.mxu0 0.0
        %531 = vmatpush1.msra.mxu0 0.0
        %532 = vmatprep.subr.mxu0 0.0
        %533 = vmatpush1.msra.mxu0 0.0
        %534 = vmatprep.subr.mxu0 0.0
        %535 = vmatpush1.msra.mxu0 0.0
        %536 = vmatprep.subr.mxu0 0.0
        %537 = vmatpush1.msra.mxu0 0.0
        %538 = vmatprep.subr.mxu0 0.0
        %539 = vmatpush1.msra.mxu0 0.0
        %540 = vmatprep.subr.mxu0 0.0
        %541 = vmatpush1.msra.mxu0 0.0
        %542 = vmatprep.subr.mxu0 0.0
        %543 = vmatpush1.msra.mxu0 0.0
        %544 = vmatprep.subr.mxu0 0.0
        %545 = vmatpush1.msra.mxu0 0.0
        %546 = vmatprep.subr.mxu0 0.0
        %547 = vmatpush1.msra.mxu0 0.0
        %548 = vmatprep.mubr.f32.mxu0 0.0
        %549 = vmatmul.mubr.f32.gmra.mrb[0].mxu0 %v473
        %v550 = vpop.f32.mrb[0].mxu0
        %v551 = vadd.f32 0.0, %v550
        %v552 = vpop.f32.mrb[0].mxu0
        %553 = vmatprep.mubr.f32.mxu0 0.0
        %554 = vmatmul.mubr.f32.gmra.mrb[0].mxu0 %v476
        %v555 = vpop.f32.mrb[0].mxu0
        %v556 = vadd.f32 0.0, %v555
        %v557 = vpop.f32.mrb[0].mxu0
        %558 = vmatprep.mubr.f32.mxu0 0.0
        %559 = vmatmul.mubr.f32.gmra.mrb[0].mxu0 %v479
        %v560 = vpop.f32.mrb[0].mxu0
        %v561 = vadd.f32 0.0, %v560
        %v562 = vpop.f32.mrb[0].mxu0
        %563 = vmatprep.mubr.f32.mxu0 0.0
        %564 = vmatmul.mubr.f32.gmra.mrb[0].mxu0 %v482
        %v565 = vpop.f32.mrb[0].mxu0
        %v566 = vadd.f32 0.0, %v565
        %v567 = vpop.f32.mrb[0].mxu0
        %568 = vdwg.mxu0
        %v569 = vmul.f32 %v551, 0.0009765625
        %v570 = vmul.f32 %v556, 0.0009765625
        %v571 = vmul.f32 %v561, 0.0009765625
        %v572 = vmul.f32 %v566, 0.0009765625
        %v573 = vmul.f32 %v569, %v569
        %v574 = vmul.f32 %v570, %v570
        %v575 = vmul.f32 %v571, %v571
        %v576 = vmul.f32 %v572, %v572
        %581 = vrot.lane.b32.xlu0 %v573, 1
        %v582 = vpop.permute.xlu0 %581
        %583 = vrot.lane.b32.xlu0 %v574, 1
        %v584 = vpop.permute.xlu0 %583
        %585 = vrot.lane.b32.xlu0 %v575, 1
        %v586 = vpop.permute.xlu0 %585
        %587 = vrot.lane.b32.xlu0 %v576, 1
        %v588 = vpop.permute.xlu0 %587
        %v593 = vsub.f32 %v569, %v582
        %v594 = vsub.f32 %v570, %v584
        %v595 = vsub.f32 %v571, %v586
        %v596 = vsub.f32 %v572, %v588
        %v597 = vadd.f32 %v593, 1e-05
        %v598 = vadd.f32 %v594, 1e-05
        %v599 = vadd.f32 %v595, 1e-05
        %v600 = vadd.f32 %v596, 1e-05
        %v601 = vrsqrt.pop %v597
        %v602 = vrsqrt.pop %v598
        %v603 = vrsqrt.pop %v599
        %v604 = vrsqrt.pop %v600
        %v605 = vxor.u32 %v335, 2147483648
        %v606 = vxor.u32 %v336, 2147483648
        %v607 = vxor.u32 %v337, 2147483648
        %v608 = vxor.u32 %v338, 2147483648
        %v609 = vmul.f32 %v605, 1.442695
        %v610 = vpow.pop %v609
        %v611 = vmul.f32 %v606, 1.442695
        %v612 = vpow.pop %v611
        %v613 = vmul.f32 %v607, 1.442695
        %v614 = vpow.pop %v613
        %v615 = vmul.f32 %v608, 1.442695
        %v616 = vpow.pop %v615
        %v617 = vadd.f32 %v610, 1.0
        %v618 = vadd.f32 %v612, 1.0
        %v619 = vadd.f32 %v614, 1.0
        %v620 = vadd.f32 %v616, 1.0
        %v621 = vrcp.pop %v617
        %v622 = vmul.f32 1.0, %v621
        %v623 = vrcp.pop %v618
        %v624 = vmul.f32 1.0, %v623
        %v625 = vrcp.pop %v619
        %v626 = vmul.f32 1.0, %v625
        %v627 = vrcp.pop %v620
        %v628 = vmul.f32 1.0, %v627
        %v629 = vmul.f32 %v335, %v622
        %v630 = vmul.f32 %v336, %v624
        %v631 = vmul.f32 %v337, %v626
        %v632 = vmul.f32 %v338, %v628
        %v634 = vsel %vm397, %v339, 0
        %v637 = vsel %vm397, %v340, 0
        %v640 = vsel %vm397, %v341, 0
        %v643 = vsel %vm397, %v342, 0
        %v646 = vsel %vm397, %v343, 0
        %v649 = vsel %vm397, %v344, 0
        %v652 = vsel %vm397, %v345, 0
        %v655 = vsel %vm397, %v346, 0
        %657 = vmatprep.subr.mxu0 0.0
        %658 = vmatpush1.msra.mxu0 %v629
        %659 = vmatprep.subr.mxu0 0.0
        %660 = vmatpush1.msra.mxu0 %v630
        %661 = vmatprep.subr.mxu0 0.0
        %662 = vmatpush1.msra.mxu0 %v631
        %663 = vmatprep.subr.mxu0 0.0
        %664 = vmatpush1.msra.mxu0 %v632
        %665 = vmatprep.subr.mxu0 0.0
        %666 = vmatpush1.msra.mxu0 0.0
        %667 = vmatprep.subr.mxu0 0.0
        %668 = vmatpush1.msra.mxu0 0.0
        %669 = vmatprep.subr.mxu0 0.0
        %670 = vmatpush1.msra.mxu0 0.0
        %671 = vmatprep.subr.mxu0 0.0
        %672 = vmatpush1.msra.mxu0 0.0
        %673 = vmatprep.subr.mxu0 0.0
        %674 = vmatpush1.msra.mxu0 0.0
        %675 = vmatprep.subr.mxu0 0.0
        %676 = vmatpush1.msra.mxu0 0.0
        %677 = vmatprep.subr.mxu0 0.0
        %678 = vmatpush1.msra.mxu0 0.0
        %679 = vmatprep.subr.mxu0 0.0
        %680 = vmatpush1.msra.mxu0 0.0
        %681 = vmatprep.subr.mxu0 0.0
        %682 = vmatpush1.msra.mxu0 0.0
        %683 = vmatprep.subr.mxu0 0.0
        %684 = vmatpush1.msra.mxu0 0.0
        %685 = vmatprep.subr.mxu0 0.0
        %686 = vmatpush1.msra.mxu0 0.0
        %687 = vmatprep.subr.mxu0 0.0
        %688 = vmatpush1.msra.mxu0 0.0
        %689 = vmatprep.subr.mxu0 0.0
        %690 = vmatpush1.msra.mxu0 0.0
        %691 = vmatprep.subr.mxu0 0.0
        %692 = vmatpush1.msra.mxu0 0.0
        %693 = vmatprep.subr.mxu0 0.0
        %694 = vmatpush1.msra.mxu0 0.0
        %695 = vmatprep.subr.mxu0 0.0
        %696 = vmatpush1.msra.mxu0 0.0
        %697 = vmatprep.subr.mxu0 0.0
        %698 = vmatpush1.msra.mxu0 0.0
        %699 = vmatprep.subr.mxu0 0.0
        %700 = vmatpush1.msra.mxu0 0.0
        %701 = vmatprep.subr.mxu0 0.0
        %702 = vmatpush1.msra.mxu0 0.0
        %703 = vmatprep.subr.mxu0 0.0
        %704 = vmatpush1.msra.mxu0 0.0
        %705 = vmatprep.subr.mxu0 0.0
        %706 = vmatpush1.msra.mxu0 0.0
        %707 = vmatprep.subr.mxu0 0.0
        %708 = vmatpush1.msra.mxu0 0.0
        %709 = vmatprep.subr.mxu0 0.0
        %710 = vmatpush1.msra.mxu0 0.0
        %711 = vmatprep.subr.mxu0 0.0
        %712 = vmatpush1.msra.mxu0 0.0
        %713 = vmatprep.subr.mxu0 0.0
        %714 = vmatpush1.msra.mxu0 0.0
        %715 = vmatprep.subr.mxu0 0.0
        %716 = vmatpush1.msra.mxu0 0.0
        %717 = vmatprep.subr.mxu0 0.0
        %718 = vmatpush1.msra.mxu0 0.0
        %719 = vmatprep.subr.mxu0 0.0
        %720 = vmatpush1.msra.mxu0 0.0
        %721 = vmatprep.mubr.f32.mxu0 0.0
        %722 = vmatmul.mubr.f32.gmra.mrb[0].mxu0 %v634
        %v723 = vpop.f32.mrb[0].mxu0
        %v724 = vadd.f32 %v347, %v723
        %v725 = vpop.f32.mrb[0].mxu0
        %726 = vmatprep.mubr.f32.mxu0 0.0
        %727 = vmatmul.mubr.f32.gmra.mrb[0].mxu0 %v637
        %v728 = vpop.f32.mrb[0].mxu0
        %v729 = vadd.f32 %v348, %v728
        %v730 = vpop.f32.mrb[0].mxu0
        %731 = vmatprep.mubr.f32.mxu0 0.0
        %732 = vmatmul.mubr.f32.gmra.mrb[0].mxu0 %v640
        %v733 = vpop.f32.mrb[0].mxu0
        %v734 = vadd.f32 %v349, %v733
        %v735 = vpop.f32.mrb[0].mxu0
        %736 = vmatprep.mubr.f32.mxu0 0.0
        %737 = vmatmul.mubr.f32.gmra.mrb[0].mxu0 %v643
        %v738 = vpop.f32.mrb[0].mxu0
        %v739 = vadd.f32 %v350, %v738
        %v740 = vpop.f32.mrb[0].mxu0
        %741 = vmatprep.mubr.f32.mxu0 0.0
        %742 = vmatmul.mubr.f32.gmra.mrb[0].mxu0 %v646
        %v743 = vpop.f32.mrb[0].mxu0
        %v744 = vadd.f32 %v351, %v743
        %v745 = vpop.f32.mrb[0].mxu0
        %746 = vmatprep.mubr.f32.mxu0 0.0
        %747 = vmatmul.mubr.f32.gmra.mrb[0].mxu0 %v649
        %v748 = vpop.f32.mrb[0].mxu0
        %v749 = vadd.f32 %v352, %v748
        %v750 = vpop.f32.mrb[0].mxu0
        %751 = vmatprep.mubr.f32.mxu0 0.0
        %752 = vmatmul.mubr.f32.gmra.mrb[0].mxu0 %v652
        %v753 = vpop.f32.mrb[0].mxu0
        %v754 = vadd.f32 %v353, %v753
        %v755 = vpop.f32.mrb[0].mxu0
        %756 = vmatprep.mubr.f32.mxu0 0.0
        %757 = vmatmul.mubr.f32.gmra.mrb[0].mxu0 %v655
        %v758 = vpop.f32.mrb[0].mxu0
        %v759 = vadd.f32 %v354, %v758
        %v760 = vpop.f32.mrb[0].mxu0
        %761 = vdwg.mxu0
        %763 = vset.pattern.permute.xlu0 0
        %764 = vperm.xlu0 %763, %v569
        %v765 = vpop.permute.xlu0 %764
        %768 = vset.pattern.permute.xlu0 0
        %769 = vperm.xlu0 %768, %v570
        %v770 = vpop.permute.xlu0 %769
        %773 = vset.pattern.permute.xlu0 0
        %774 = vperm.xlu0 %773, %v571
        %v775 = vpop.permute.xlu0 %774
        %778 = vset.pattern.permute.xlu0 0
        %779 = vperm.xlu0 %778, %v572
        %v780 = vpop.permute.xlu0 %779
        %v782 = vsub.f32 %v327, %v765
        %v783 = vsub.f32 %v328, %v765
        %v784 = vsub.f32 %v329, %v770
        %v785 = vsub.f32 %v330, %v770
        %v786 = vsub.f32 %v331, %v775
        %v787 = vsub.f32 %v332, %v775
        %v788 = vsub.f32 %v333, %v780
        %v789 = vsub.f32 %v334, %v780
        %v790 = vadd.f32 %v724, 1.0
        %v791 = vadd.f32 %v729, 1.0
        %v792 = vadd.f32 %v734, 1.0
        %v793 = vadd.f32 %v739, 1.0
        %798 = vrot.lane.b32.xlu0 %v790, 1
        %v799 = vpop.permute.xlu0 %798
        %800 = vrot.lane.b32.xlu0 %v791, 1
        %v801 = vpop.permute.xlu0 %800
        %802 = vrot.lane.b32.xlu0 %v792, 1
        %v803 = vpop.permute.xlu0 %802
        %804 = vrot.lane.b32.xlu0 %v793, 1
        %v805 = vpop.permute.xlu0 %804
        %v810 = vmul.f32 %v601, %v799
        %v811 = vmul.f32 %v602, %v801
        %v812 = vmul.f32 %v603, %v803
        %v813 = vmul.f32 %v604, %v805
        %815 = vset.pattern.permute.xlu0 1
        %816 = vperm.xlu0 %815, %v810
        %v817 = vpop.permute.xlu0 %816
        %820 = vset.pattern.permute.xlu0 1
        %821 = vperm.xlu0 %820, %v811
        %v822 = vpop.permute.xlu0 %821
        %825 = vset.pattern.permute.xlu0 1
        %826 = vperm.xlu0 %825, %v812
        %v827 = vpop.permute.xlu0 %826
        %830 = vset.pattern.permute.xlu0 1
        %831 = vperm.xlu0 %830, %v813
        %v832 = vpop.permute.xlu0 %831
        %v834 = vmul.f32 %v782, %v817
        %v835 = vmul.f32 %v783, %v817
        %v836 = vmul.f32 %v784, %v822
        %v837 = vmul.f32 %v785, %v822
        %v838 = vmul.f32 %v786, %v827
        %v839 = vmul.f32 %v787, %v827
        %v840 = vmul.f32 %v788, %v832
        %v841 = vmul.f32 %v789, %v832
        %843 = vset.pattern.permute.xlu0 0
        %844 = vperm.xlu0 %843, %v744
        %v845 = vpop.permute.xlu0 %844
        %848 = vset.pattern.permute.xlu0 0
        %849 = vperm.xlu0 %848, %v749
        %v850 = vpop.permute.xlu0 %849
        %853 = vset.pattern.permute.xlu0 0
        %854 = vperm.xlu0 %853, %v754
        %v855 = vpop.permute.xlu0 %854
        %858 = vset.pattern.permute.xlu0 0
        %859 = vperm.xlu0 %858, %v759
        %v860 = vpop.permute.xlu0 %859
        %v862 = vadd.f32 %v834, %v845
        %v863 = vadd.f32 %v835, %v845
        %v864 = vadd.f32 %v836, %v850
        %v865 = vadd.f32 %v837, %v850
        %v866 = vadd.f32 %v838, %v855
        %v867 = vadd.f32 %v839, %v855
        %v868 = vadd.f32 %v840, %v860
        %v869 = vadd.f32 %v841, %v860
        %v870 = vxor.u32 %v862, 2147483648
        %v871 = vxor.u32 %v863, 2147483648
        %v872 = vxor.u32 %v864, 2147483648
        %v873 = vxor.u32 %v865, 2147483648
        %v874 = vxor.u32 %v866, 2147483648
        %v875 = vxor.u32 %v867, 2147483648
        %v876 = vxor.u32 %v868, 2147483648
        %v877 = vxor.u32 %v869, 2147483648
        %v878 = vmul.f32 %v870, 1.442695
        %v879 = vpow.pop %v878
        %v880 = vmul.f32 %v871, 1.442695
        %v881 = vpow.pop %v880
        %v882 = vmul.f32 %v872, 1.442695
        %v883 = vpow.pop %v882
        %v884 = vmul.f32 %v873, 1.442695
        %v885 = vpow.pop %v884
        %v886 = vmul.f32 %v874, 1.442695
        %v887 = vpow.pop %v886
        %v888 = vmul.f32 %v875, 1.442695
        %v889 = vpow.pop %v888
        %v890 = vmul.f32 %v876, 1.442695
        %v891 = vpow.pop %v890
        %v892 = vmul.f32 %v877, 1.442695
        %v893 = vpow.pop %v892
        %v894 = vadd.f32 %v879, 1.0
        %v895 = vadd.f32 %v881, 1.0
        %v896 = vadd.f32 %v883, 1.0
        %v897 = vadd.f32 %v885, 1.0
        %v898 = vadd.f32 %v887, 1.0
        %v899 = vadd.f32 %v889, 1.0
        %v900 = vadd.f32 %v891, 1.0
        %v901 = vadd.f32 %v893, 1.0
        %v902 = vrcp.pop %v894
        %v903 = vmul.f32 1.0, %v902
        %v904 = vrcp.pop %v895
        %v905 = vmul.f32 1.0, %v904
        %v906 = vrcp.pop %v896
        %v907 = vmul.f32 1.0, %v906
        %v908 = vrcp.pop %v897
        %v909 = vmul.f32 1.0, %v908
        %v910 = vrcp.pop %v898
        %v911 = vmul.f32 1.0, %v910
        %v912 = vrcp.pop %v899
        %v913 = vmul.f32 1.0, %v912
        %v914 = vrcp.pop %v900
        %v915 = vmul.f32 1.0, %v914
        %v916 = vrcp.pop %v901
        %v917 = vmul.f32 1.0, %v916
        %v918 = vmul.f32 %v862, %v903
        %v919 = vmul.f32 %v863, %v905
        %v920 = vmul.f32 %v864, %v907
        %v921 = vmul.f32 %v865, %v909
        %v922 = vmul.f32 %v866, %v911
        %v923 = vmul.f32 %v867, %v913
        %v924 = vmul.f32 %v868, %v915
        %v925 = vmul.f32 %v869, %v917
        %v926 = vpack.c.bf16 %v920, %v918
        %v927 = vpack.c.bf16 %v921, %v919
        %v928 = vpack.c.bf16 %v924, %v922
        %v929 = vpack.c.bf16 %v925, %v923
        %v930 = vld [vmem:[%s6] sm:$0xff]
        %v931 = vld [vmem:[%s6 + $0x8] sm:$0xf]
        %v932 = vld [vmem:[%s6 + $0xc] sm:$0xff]
        %v933 = vld [vmem:[%s6 + $0x14] sm:$0xf]
        %v934 = vld [vmem:[%s6 + $0x18] sm:$0xff]
        %v935 = vld [vmem:[%s6 + $0x20] sm:$0xf]
        %v936 = vld [vmem:[%s6 + $0x24] sm:$0xff]
        %v937 = vld [vmem:[%s6 + $0x2c] sm:$0xf]
        %v938 = vlaneseq
        %v939 = vand.u32 %v938, 127
        %v940 = vadd.s32 %v939, 128
        %vm941 = vcmp.lt.s32.totalorder %v939, 0
        %v942 = vsub.s32 0, %v939
        %v943 = vsel %vm941, %v942, %v939
        %v944 = vshrl.u32 %v943, 4
        %v945 = vand.u32 %v943, 15
        %v946 = vsub.s32 0, %v945
        %v947 = vsel %vm941, %v946, %v945
        %vm948 = vcmp.lt.s32.totalorder %v940, 0
        %v949 = vsub.s32 0, %v940
        %v950 = vsel %vm948, %v949, %v940
        %v951 = vshrl.u32 %v950, 4
        %v952 = vand.u32 %v950, 15
        %v953 = vsub.s32 0, %v952
        %v954 = vsel %vm948, %v953, %v952
        %vm955 = vcmp.ne.s32.totalorder %v947, 0
        %vm956 = vcmp.ne.s32.totalorder %v954, 0
        %vm957 = vcmp.lt.s32.totalorder %v947, 0
        %vm958 = vcmp.lt.s32.totalorder %v954, 0
        %vm959 = vmand %vm957, %vm955
        %vm960 = vmand %vm958, %vm956
        %v961 = vadd.s32 %v947, 16
        %v962 = vadd.s32 %v954, 16
        %v963 = vsel %vm959, %v961, %v947
        %v964 = vsel %vm960, %v962, %v954
        %vm965 = vcmp.eq.s32.totalorder %v963, 15
        %vm966 = vcmp.eq.s32.totalorder %v964, 15
        %v967 = vsel %vm965, 1, 0
        %v968 = vsel %vm966, 1, 0
        %vm969 = vcmp.eq.s32.totalorder %v967, 1
        %vm970 = vcmp.eq.s32.totalorder %v968, 1
        %vm971 = vmpackc.low %vm970, %vm969
        %v972 = vsel %vm971, 65537, 0
        %v973 = vlaneseq
        %v974 = vshrl.u32 %v973, 7
        %v975 = vsub.s32 0, %v974
        %v976 = vrot.slane %v972, %v975
        %v977 = vlaneseq
        %v978 = vshrl.u32 %v977, 7
        %v979 = vsub.s32 4, %v978
        %v980 = vrot.slane %v972, %v979
        %vm981 = vcmp.ne.s16.totalorder %v976, 0
        %vm982 = vcmp.ne.s16.totalorder %v980, 0
        %v983 = vsel %vm981, 0, %v926
        %v984 = vsel %vm982, 0, %v927
        %v985 = vsel %vm981, 0, %v928
        %v986 = vsel %vm982, 0, %v929
        %vm987 = vcmp.eq.s32.totalorder %v963, 0
        %vm988 = vcmp.eq.s32.totalorder %v964, 0
        %v989 = vsel %vm987, 1, 0
        %v990 = vsel %vm988, 1, 0
        %vm991 = vcmp.eq.s32.totalorder %v989, 1
        %vm992 = vcmp.eq.s32.totalorder %v990, 1
        %vm993 = vmpackc.low %vm992, %vm991
        %v994 = vsel %vm993, 65537, 0
        %v995 = vlaneseq
        %v996 = vshrl.u32 %v995, 7
        %v997 = vsub.s32 0, %v996
        %v998 = vrot.slane %v994, %v997
        %v999 = vlaneseq
        %v1000 = vshrl.u32 %v999, 7
        %v1001 = vsub.s32 4, %v1000
        %v1002 = vrot.slane %v994, %v1001
        %vm1003 = vcmp.ne.s16.totalorder %v998, 0
        %vm1004 = vcmp.ne.s16.totalorder %v1002, 0
        %v1005 = vsel %vm1003, 0, %v926
        %v1006 = vsel %vm1004, 0, %v927
        %v1007 = vsel %vm1003, 0, %v928
        %v1008 = vsel %vm1004, 0, %v929
        %1013 = vrot.lane.b32.xlu0 %v983, 17
        %v1014 = vpop.permute.xlu0 %1013
        %1015 = vrot.lane.b32.xlu0 %v984, 17
        %v1016 = vpop.permute.xlu0 %1015
        %1017 = vrot.lane.b32.xlu0 %v985, 17
        %v1018 = vpop.permute.xlu0 %1017
        %1019 = vrot.lane.b32.xlu0 %v986, 17
        %v1020 = vpop.permute.xlu0 %1019
        %vm1021 = vcmask 138240
        %v1022 = vsel %vm1021, %v1014, %v1016
        %v1023 = vsel %vm1021, %v1018, %v1020
        %vm1026 = vcmask 138240
        %v1029 = vsel %vm1026, 0, %v1014
        %v1032 = vsel %vm1026, 0, %v1018
        %1034 = vst [vmem:[#allocation2] sm:$0xff] %v1029
        %1035 = vst [vmem:[#allocation2 + $0x8] sm:$0xff] %v1022
        %1036 = vst [vmem:[#allocation2 + $0x10] sm:$0xff] %v1032
        %1037 = vst [vmem:[#allocation2 + $0x18] sm:$0xff] %v1023
        %1042 = vrot.lane.b32.xlu0 %v926, 16
        %v1043 = vpop.permute.xlu0 %1042
        %1044 = vrot.lane.b32.xlu0 %v927, 16
        %v1045 = vpop.permute.xlu0 %1044
        %1046 = vrot.lane.b32.xlu0 %v928, 16
        %v1047 = vpop.permute.xlu0 %1046
        %1048 = vrot.lane.b32.xlu0 %v929, 16
        %v1049 = vpop.permute.xlu0 %1048
        %vm1050 = vcmask 130048
        %v1051 = vsel %vm1050, %v1043, %v1045
        %v1052 = vsel %vm1050, %v1047, %v1049
        %vm1055 = vcmask 130048
        %v1057 = vsel %vm1055, 0, %v1043
        %v1060 = vsel %vm1055, 0, %v1047
        %1062 = vst [vmem:[#allocation2 + $0x20] sm:$0xff] %v1057
        %1063 = vst [vmem:[#allocation2 + $0x28] sm:$0xff] %v1051
        %1064 = vst [vmem:[#allocation2 + $0x30] sm:$0xff] %v1060
        %1065 = vst [vmem:[#allocation2 + $0x38] sm:$0xff] %v1052
        %1070 = vrot.lane.b32.xlu0 %v1005, 15
        %v1071 = vpop.permute.xlu0 %1070
        %1072 = vrot.lane.b32.xlu0 %v1006, 15
        %v1073 = vpop.permute.xlu0 %1072
        %1074 = vrot.lane.b32.xlu0 %v1007, 15
        %v1075 = vpop.permute.xlu0 %1074
        %1076 = vrot.lane.b32.xlu0 %v1008, 15
        %v1077 = vpop.permute.xlu0 %1076
        %vm1078 = vcmask 121856
        %v1079 = vsel %vm1078, %v1071, %v1073
        %v1080 = vsel %vm1078, %v1075, %v1077
        %vm1083 = vcmask 121856
        %v1085 = vsel %vm1083, 0, %v1071
        %v1088 = vsel %vm1083, 0, %v1075
        %1090 = vst [vmem:[#allocation2 + $0x40] sm:$0xff] %v1085
        %1091 = vst [vmem:[#allocation2 + $0x48] sm:$0xff] %v1079
        %1092 = vst [vmem:[#allocation2 + $0x50] sm:$0xff] %v1088
        %1093 = vst [vmem:[#allocation2 + $0x58] sm:$0xff] %v1080
        %1094 = vrot.lane.b32.xlu0 %v983, 1
        %v1095 = vpop.permute.xlu0 %1094
        %1096 = vrot.lane.b32.xlu0 %v984, 1
        %v1097 = vpop.permute.xlu0 %1096
        %1098 = vrot.lane.b32.xlu0 %v985, 1
        %v1099 = vpop.permute.xlu0 %1098
        %1100 = vrot.lane.b32.xlu0 %v986, 1
        %v1101 = vpop.permute.xlu0 %1100
        %vm1102 = vcmask 7168
        %v1103 = vsel %vm1102, %v1095, %v1097
        %v1104 = vsel %vm1102, %v1099, %v1101
        %v1108 = vsel %vm392, 0, %v1095
        %v1111 = vsel %vm392, 0, %v1099
        %1113 = vst [vmem:[#allocation2 + $0x60] sm:$0xff] %v1108
        %1114 = vst [vmem:[#allocation2 + $0x68] sm:$0xff] %v1103
        %1115 = vst [vmem:[#allocation2 + $0x70] sm:$0xff] %v1111
        %1116 = vst [vmem:[#allocation2 + $0x78] sm:$0xff] %v1104
        %1117 = vst [vmem:[#allocation2 + $0x80] sm:$0xff] %v926
        %1118 = vst [vmem:[#allocation2 + $0x88] sm:$0xff] %v927
        %1119 = vst [vmem:[#allocation2 + $0x90] sm:$0xff] %v928
        %1120 = vst [vmem:[#allocation2 + $0x98] sm:$0xff] %v929
        %1121 = vrot.lane.b32.xlu0 %v1005, 127
        %v1122 = vpop.permute.xlu0 %1121
        %1123 = vrot.lane.b32.xlu0 %v1006, 127
        %v1124 = vpop.permute.xlu0 %1123
        %1125 = vrot.lane.b32.xlu0 %v1007, 127
        %v1126 = vpop.permute.xlu0 %1125
        %1127 = vrot.lane.b32.xlu0 %v1008, 127
        %v1128 = vpop.permute.xlu0 %1127
        %vm1129 = vcmask 1039360
        %v1130 = vsel %vm1129, %v1122, %v1124
        %v1131 = vsel %vm1129, %v1126, %v1128
        %vm1134 = vcmask 1039360
        %v1136 = vsel %vm1134, %v1124, 0
        %v1139 = vsel %vm1134, %v1128, 0
        %1141 = vst [vmem:[#allocation2 + $0xa0] sm:$0xff] %v1130
        %1142 = vst [vmem:[#allocation2 + $0xa8] sm:$0xff] %v1136
        %1143 = vst [vmem:[#allocation2 + $0xb0] sm:$0xff] %v1131
        %1144 = vst [vmem:[#allocation2 + $0xb8] sm:$0xff] %v1139
        %1145 = vrot.lane.b32.xlu0 %v983, 113
        %v1146 = vpop.permute.xlu0 %1145
        %1147 = vrot.lane.b32.xlu0 %v984, 113
        %v1148 = vpop.permute.xlu0 %1147
        %1149 = vrot.lane.b32.xlu0 %v985, 113
        %v1150 = vpop.permute.xlu0 %1149
        %1151 = vrot.lane.b32.xlu0 %v986, 113
        %v1152 = vpop.permute.xlu0 %1151
        %vm1153 = vcmask 924672
        %v1154 = vsel %vm1153, %v1146, %v1148
        %v1155 = vsel %vm1153, %v1150, %v1152
        %vm1158 = vcmask 924672
        %v1160 = vsel %vm1158, %v1148, 0
        %v1163 = vsel %vm1158, %v1152, 0
        %1165 = vst [vmem:[#allocation2 + $0xc0] sm:$0xff] %v1154
        %1166 = vst [vmem:[#allocation2 + $0xc8] sm:$0xff] %v1160
        %1167 = vst [vmem:[#allocation2 + $0xd0] sm:$0xff] %v1155
        %1168 = vst [vmem:[#allocation2 + $0xd8] sm:$0xff] %v1163
        %1169 = vrot.lane.b32.xlu0 %v926, 112
        %v1170 = vpop.permute.xlu0 %1169
        %1171 = vrot.lane.b32.xlu0 %v927, 112
        %v1172 = vpop.permute.xlu0 %1171
        %1173 = vrot.lane.b32.xlu0 %v928, 112
        %v1174 = vpop.permute.xlu0 %1173
        %1175 = vrot.lane.b32.xlu0 %v929, 112
        %v1176 = vpop.permute.xlu0 %1175
        %vm1177 = vcmask 916480
        %v1178 = vsel %vm1177, %v1170, %v1172
        %v1179 = vsel %vm1177, %v1174, %v1176
        %vm1182 = vcmask 916480
        %v1184 = vsel %vm1182, %v1172, 0
        %v1187 = vsel %vm1182, %v1176, 0
        %1189 = vst [vmem:[#allocation2 + $0xe0] sm:$0xff] %v1178
        %1190 = vst [vmem:[#allocation2 + $0xe8] sm:$0xff] %v1184
        %1191 = vst [vmem:[#allocation2 + $0xf0] sm:$0xff] %v1179
        %1192 = vst [vmem:[#allocation2 + $0xf8] sm:$0xff] %v1187
        %1193 = vrot.lane.b32.xlu0 %v1005, 111
        %v1194 = vpop.permute.xlu0 %1193
        %1195 = vrot.lane.b32.xlu0 %v1006, 111
        %v1196 = vpop.permute.xlu0 %1195
        %1197 = vrot.lane.b32.xlu0 %v1007, 111
        %v1198 = vpop.permute.xlu0 %1197
        %1199 = vrot.lane.b32.xlu0 %v1008, 111
        %v1200 = vpop.permute.xlu0 %1199
        %vm1201 = vcmask 908288
        %v1202 = vsel %vm1201, %v1194, %v1196
        %v1203 = vsel %vm1201, %v1198, %v1200
        %vm1206 = vcmask 908288
        %v1208 = vsel %vm1206, %v1196, 0
        %v1211 = vsel %vm1206, %v1200, 0
        %1213 = vst [vmem:[#allocation2 + $0x100] sm:$0xff] %v1202
        %1214 = vst [vmem:[#allocation2 + $0x108] sm:$0xff] %v1208
        %1215 = vst [vmem:[#allocation2 + $0x110] sm:$0xff] %v1203
        %1216 = vst [vmem:[#allocation2 + $0x118] sm:$0xff] %v1211
        %v1217 = vld [vmem:[#allocation2] sm:$0xff]
        %v1218 = vld [vmem:[#allocation2 + $0x8] sm:$0xff]
        %v1219 = vld [vmem:[#allocation2 + $0x10] sm:$0xff]
        %v1220 = vld [vmem:[#allocation2 + $0x18] sm:$0xff]
        %v1221 = vld [vmem:[#allocation2 + $0x20] sm:$0xff]
        %v1222 = vld [vmem:[#allocation2 + $0x28] sm:$0xff]
        %v1223 = vld [vmem:[#allocation2 + $0x30] sm:$0xff]
        %v1224 = vld [vmem:[#allocation2 + $0x38] sm:$0xff]
        %v1225 = vld [vmem:[#allocation2 + $0x40] sm:$0xff]
        %v1226 = vld [vmem:[#allocation2 + $0x48] sm:$0xff]
        %v1227 = vld [vmem:[#allocation2 + $0x50] sm:$0xff]
        %v1228 = vld [vmem:[#allocation2 + $0x58] sm:$0xff]
        %v1229 = vld [vmem:[#allocation2 + $0x60] sm:$0xff]
        %v1230 = vld [vmem:[#allocation2 + $0x68] sm:$0xff]
        %v1231 = vld [vmem:[#allocation2 + $0x70] sm:$0xff]
        %v1232 = vld [vmem:[#allocation2 + $0x78] sm:$0xff]
        %v1233 = vld [vmem:[#allocation2 + $0x80] sm:$0xff]
        %v1234 = vld [vmem:[#allocation2 + $0x88] sm:$0xff]
        %v1235 = vld [vmem:[#allocation2 + $0x90] sm:$0xff]
        %v1236 = vld [vmem:[#allocation2 + $0x98] sm:$0xff]
        %v1237 = vld [vmem:[#allocation2 + $0xa0] sm:$0xff]
        %v1238 = vld [vmem:[#allocation2 + $0xa8] sm:$0xff]
        %v1239 = vld [vmem:[#allocation2 + $0xb0] sm:$0xff]
        %v1240 = vld [vmem:[#allocation2 + $0xb8] sm:$0xff]
        %v1241 = vld [vmem:[#allocation2 + $0xc0] sm:$0xff]
        %v1242 = vld [vmem:[#allocation2 + $0xc8] sm:$0xff]
        %v1243 = vld [vmem:[#allocation2 + $0xd0] sm:$0xff]
        %v1244 = vld [vmem:[#allocation2 + $0xd8] sm:$0xff]
        %v1245 = vld [vmem:[#allocation2 + $0xe0] sm:$0xff]
        %v1246 = vld [vmem:[#allocation2 + $0xe8] sm:$0xff]
        %v1247 = vld [vmem:[#allocation2 + $0xf0] sm:$0xff]
        %v1248 = vld [vmem:[#allocation2 + $0xf8] sm:$0xff]
        %v1249 = vld [vmem:[#allocation2 + $0x100] sm:$0xff]
        %v1250 = vld [vmem:[#allocation2 + $0x108] sm:$0xff]
        %v1251 = vld [vmem:[#allocation2 + $0x110] sm:$0xff]
        %v1252 = vld [vmem:[#allocation2 + $0x118] sm:$0xff]
        %v1253 = vld [vmem:[%s7] sm:$0xff]
        %v1254 = vld [vmem:[%s7 + $0x8] sm:$0xff]
        %v1255 = vld [vmem:[%s7 + $0x10] sm:$0xff]
        %v1256 = vld [vmem:[%s7 + $0x18] sm:$0xff]
        %1258 = vset.pattern.permute.xlu0 0
        %1259 = vperm.xlu0 %1258, %v1253
        %v1260 = vpop.permute.xlu0 %1259
        %1263 = vset.pattern.permute.xlu0 0
        %1264 = vperm.xlu0 %1263, %v1254
        %v1265 = vpop.permute.xlu0 %1264
        %1268 = vset.pattern.permute.xlu0 0
        %1269 = vperm.xlu0 %1268, %v1255
        %v1270 = vpop.permute.xlu0 %1269
        %1273 = vset.pattern.permute.xlu0 0
        %1274 = vperm.xlu0 %1273, %v1256
        %v1275 = vpop.permute.xlu0 %1274
        %v1285 = vunpack.c.l.b16 %v930
        %v1286 = vunpack.c.h.b16 %v930
        %v1287 = vunpack.c.l.b16 %v931
        %v1288 = vunpack.c.l.b16 %v932
        %v1289 = vunpack.c.h.b16 %v932
        %v1290 = vunpack.c.l.b16 %v933
        %v1291 = vunpack.c.l.b16 %v934
        %v1292 = vunpack.c.h.b16 %v934
        %v1293 = vunpack.c.l.b16 %v935
        %v1294 = vunpack.c.l.b16 %v936
        %v1295 = vunpack.c.h.b16 %v936
        %v1296 = vunpack.c.l.b16 %v937
        %v1297 = vpack.c.b16 %v1288, %v1285
        %v1298 = vpack.c.b16 %v1289, %v1286
        %v1299 = vpack.c.b16 %v1290, %v1287
        %v1300 = vpack.c.b16 %v1294, %v1291
        %v1301 = vpack.c.b16 %v1295, %v1292
        %v1302 = vpack.c.b16 %v1296, %v1293
        %v1308 = vsel %vm397, %v1299, 0
        %v1311 = vsel %vm397, %v1302, 0
        %1313 = vmatprep.subr.bf16.mxu0 %v1218
        %1314 = vmatpush1.bf16.msra.mxu0 %v1217
        %1315 = vmatprep.subr.bf16.mxu0 %v1220
        %1316 = vmatpush1.bf16.msra.mxu0 %v1219
        %1317 = vmatprep.subr.bf16.mxu0 %v1222
        %1318 = vmatpush1.bf16.msra.mxu0 %v1221
        %1319 = vmatprep.subr.bf16.mxu0 %v1224
        %1320 = vmatpush1.bf16.msra.mxu0 %v1223
        %1321 = vmatprep.subr.bf16.mxu0 %v1226
        %1322 = vmatpush1.bf16.msra.mxu0 %v1225
        %1323 = vmatprep.subr.bf16.mxu0 %v1228
        %1324 = vmatpush1.bf16.msra.mxu0 %v1227
        %1325 = vmatprep.subr.bf16.mxu0 %v1230
        %1326 = vmatpush1.bf16.msra.mxu0 %v1229
        %1327 = vmatprep.subr.bf16.mxu0 %v1232
        %1328 = vmatpush1.bf16.msra.mxu0 %v1231
        %1329 = vmatprep.subr.bf16.mxu0 %v1234
        %1330 = vmatpush1.bf16.msra.mxu0 %v1233
        %1331 = vmatprep.subr.bf16.mxu0 %v1236
        %1332 = vmatpush1.bf16.msra.mxu0 %v1235
        %1333 = vmatprep.subr.bf16.mxu0 %v1238
        %1334 = vmatpush1.bf16.msra.mxu0 %v1237
        %1335 = vmatprep.subr.bf16.mxu0 %v1240
        %1336 = vmatpush1.bf16.msra.mxu0 %v1239
        %1337 = vmatprep.subr.bf16.mxu0 %v1242
        %1338 = vmatpush1.bf16.msra.mxu0 %v1241
        %1339 = vmatprep.subr.bf16.mxu0 %v1244
        %1340 = vmatpush1.bf16.msra.mxu0 %v1243
        %1341 = vmatprep.subr.bf16.mxu0 %v1246
        %1342 = vmatpush1.bf16.msra.mxu0 %v1245
        %1343 = vmatprep.subr.bf16.mxu0 %v1248
        %1344 = vmatpush1.bf16.msra.mxu0 %v1247
        %1345 = vmatprep.mubr.bf16.mxu0 %v1298
        %1346 = vmatmul.mubr.bf16.gmra.mrb[0].mxu0 %v1297
        %v1347 = vpop.f32.mrb[0].mxu0
        %v1348 = vadd.f32 %v1260, %v1347
        %v1349 = vpop.f32.mrb[0].mxu0
        %v1350 = vadd.f32 %v1260, %v1349
        %v1351 = vpop.f32.mrb[0].mxu0
        %v1352 = vadd.f32 %v1265, %v1351
        %v1353 = vpop.f32.mrb[0].mxu0
        %v1354 = vadd.f32 %v1265, %v1353
        %1355 = vmatprep.mubr.bf16.mxu0 %v1301
        %1356 = vmatmul.mubr.bf16.gmra.mrb[0].mxu0 %v1300
        %v1357 = vpop.f32.mrb[0].mxu0
        %v1358 = vadd.f32 %v1270, %v1357
        %v1359 = vpop.f32.mrb[0].mxu0
        %v1360 = vadd.f32 %v1270, %v1359
        %v1361 = vpop.f32.mrb[0].mxu0
        %v1362 = vadd.f32 %v1275, %v1361
        %v1363 = vpop.f32.mrb[0].mxu0
        %v1364 = vadd.f32 %v1275, %v1363
        %1365 = vdwg.mxu0
        %1366 = vmatprep.subr.bf16.mxu0 %v1250
        %1367 = vmatpush1.bf16.msra.mxu0 %v1249
        %1368 = vmatprep.subr.bf16.mxu0 %v1252
        %1369 = vmatpush1.bf16.msra.mxu0 %v1251
        %1370 = vmatprep.subr.bf16.mxu0 0
        %1371 = vmatpush1.bf16.msra.mxu0 0
        %1372 = vmatprep.subr.bf16.mxu0 0
        %1373 = vmatpush1.bf16.msra.mxu0 0
        %1374 = vmatprep.subr.bf16.mxu0 0
        %1375 = vmatpush1.bf16.msra.mxu0 0
        %1376 = vmatprep.subr.bf16.mxu0 0
        %1377 = vmatpush1.bf16.msra.mxu0 0
        %1378 = vmatprep.subr.bf16.mxu0 0
        %1379 = vmatpush1.bf16.msra.mxu0 0
        %1380 = vmatprep.subr.bf16.mxu0 0
        %1381 = vmatpush1.bf16.msra.mxu0 0
        %1382 = vmatprep.subr.bf16.mxu0 0
        %1383 = vmatpush1.bf16.msra.mxu0 0
        %1384 = vmatprep.subr.bf16.mxu0 0
        %1385 = vmatpush1.bf16.msra.mxu0 0
        %1386 = vmatprep.subr.bf16.mxu0 0
        %1387 = vmatpush1.bf16.msra.mxu0 0
        %1388 = vmatprep.subr.bf16.mxu0 0
        %1389 = vmatpush1.bf16.msra.mxu0 0
        %1390 = vmatprep.subr.bf16.mxu0 0
        %1391 = vmatpush1.bf16.msra.mxu0 0
        %1392 = vmatprep.subr.bf16.mxu0 0
        %1393 = vmatpush1.bf16.msra.mxu0 0
        %1394 = vmatprep.subr.bf16.mxu0 0
        %1395 = vmatpush1.bf16.msra.mxu0 0
        %1396 = vmatprep.subr.bf16.mxu0 0
        %1397 = vmatpush1.bf16.msra.mxu0 0
        %1398 = vmatprep.mubr.bf16.mxu0 0
        %1399 = vmatmul.mubr.bf16.gmra.mrb[0].mxu0 %v1308
        %v1400 = vpop.f32.mrb[0].mxu0
        %v1401 = vadd.f32 %v1348, %v1400
        %v1402 = vpop.f32.mrb[0].mxu0
        %v1403 = vadd.f32 %v1350, %v1402
        %v1404 = vpop.f32.mrb[0].mxu0
        %v1405 = vadd.f32 %v1352, %v1404
        %v1406 = vpop.f32.mrb[0].mxu0
        %v1407 = vadd.f32 %v1354, %v1406
        %1408 = vmatprep.mubr.bf16.mxu0 0
        %1409 = vmatmul.mubr.bf16.gmra.mrb[0].mxu0 %v1311
        %v1410 = vpop.f32.mrb[0].mxu0
        %v1411 = vadd.f32 %v1358, %v1410
        %v1412 = vpop.f32.mrb[0].mxu0
        %v1413 = vadd.f32 %v1360, %v1412
        %v1414 = vpop.f32.mrb[0].mxu0
        %v1415 = vadd.f32 %v1362, %v1414
        %v1416 = vpop.f32.mrb[0].mxu0
        %v1417 = vadd.f32 %v1364, %v1416
        %1418 = vdwg.mxu0
        %1419 = vst [vmem:[%s313] sm:$0xff] %v1401
        %1420 = vst [vmem:[%s313 + $0x8] sm:$0xff] %v1403
        %1421 = vst [vmem:[%s313 + $0x10] sm:$0xff] %v1405
        %1422 = vst [vmem:[%s313 + $0x18] sm:$0xff] %v1407
        %1423 = vst [vmem:[%s313 + $0x20] sm:$0xff] %v1411
        %1424 = vst [vmem:[%s313 + $0x28] sm:$0xff] %v1413
        %1425 = vst [vmem:[%s313 + $0x30] sm:$0xff] %v1415
        %1426 = vst [vmem:[%s313 + $0x38] sm:$0xff] %v1417
        %s1427 = sand.u32 %s208, 1
        %s1428 = scalar_lea.sflag [#allocation4], %s1427
        %s1429 = sand.u32 %s208, 1
        %s1430 = smul.addr %s1429, 64
        %s1431 = scalar_lea.vmem [#allocation3], %s1430
        // Predicated region
        $region53: #{tpu_custom_call.1} parent=51 // pred_check
          %p1432 = pneg %p218
        $region54: #{tpu_custom_call.1} parent=51 // pred_check_branch
          %1434 = sbr.rel (%p1432) target = $region56
        $region55: #{tpu_custom_call.1} parent=51 // pred_region
          %s1436 = ssub.s32 1024, 1024
          %1437 = vsyncadd %s1428, %s1436
          %s1438 = smul.addr %s22, 8
          %s1439 = smul.addr %s1438, 128
          %s1440 = scalar_lea.hbm %s8, %s1439
          %s1441 = sshll.u32 %s1431, 4
          %s1442 = int_to_ptr.vmem [resolvable:$true] %s1441
          %1447 = dma.vmem_to_hbm [thread:$0]  %s1442, 1024, %s1440, %s1428, 256, 256, 16
        $region56: #{tpu_custom_call.1} parent=51 // pred_fallthru
          _
      $region52: #{tpu_custom_call.1} parent=5 // pred_fallthru
        _
      %p1448 = scmp.le.s32.totalorder 2, %s17
      // Predicated region
      $region57: #{tpu_custom_call.1} parent=5 // pred_check
        %p1449 = pneg %p1448
      $region58: #{tpu_custom_call.1} parent=5 // pred_check_branch
        %1451 = sbr.rel (%p1449) target = $region60
      $region59: #{tpu_custom_call.1} parent=5 // pred_region
        %s1452 = ssub.s32 %s17, 2
        // Predicated region
        $region61: #{tpu_custom_call.1} parent=59 // pred_check
          %p1453 = pneg %p224
        $region62: #{tpu_custom_call.1} parent=59 // pred_check_branch
          %1455 = sbr.rel (%p1453) target = $region64
        $region63: #{tpu_custom_call.1} parent=59 // pred_region
          %s1456 = sand.u32 %s209, 1
          %s1457 = scalar_lea.sflag [#allocation4], %s1456
          %s1458 = sand.u32 %s209, 1
          %s1459 = smul.addr %s1458, 64
          %s1460 = scalar_lea.vmem [#allocation3], %s1459
          %1461 = dma.done %s1457, 1024
        $region64: #{tpu_custom_call.1} parent=59 // pred_fallthru
          _
      $region60: #{tpu_custom_call.1} parent=5 // pred_fallthru
        _
    $region6: #{tpu_custom_call.1} parent=1 // loop_footer
      %s21 = sadd.s32 1, %s17
    $region7: #{tpu_custom_call.1} parent=1 // loop_footer_branch
      %16 = sbr.rel target = $region3
    $region8: #{tpu_custom_call.1} parent=1 // loop_exit
      _
    %1462 = vsyncpa [#allocation4], 1
    %s1463 = scalar_lea.sflag [#allocation4], 1
    %1464 = vsyncpa %s1463, 1

</llo_original>
